<compile_context>
chip_gen: v7x
topology: tpu7x:2x2x1
jax: 0.10.0
libtpu: 0.0.40
codegen_flags: <defaults>
</compile_context>

<pallas_src>
import math
from functools import partial

import numpy as np
import jax
import jax.numpy as jnp
from jax.experimental import pallas as pl
from jax.experimental.pallas import tpu as pltpu

WINDOW_SIZE = 11
SIGMA = 1.5
C1 = 0.01 ** 2
C2 = 0.03 ** 2
_P = WINDOW_SIZE // 2


def _gaussian_1d(window_size=WINDOW_SIZE, sigma=SIGMA):
    # Mirrors gaussian() from the PyTorch module (float32, normalized).
    g = np.array(
        [math.exp(-((x - window_size // 2) ** 2) / (2.0 * sigma ** 2))
         for x in range(window_size)],
        dtype=np.float32,
    )
    return (g / g.sum()).astype(np.float32)


_G1D = _gaussian_1d()
_W2D = np.outer(_G1D, _G1D).astype(np.float32)  # used by the reference only


def _band_matrix(n):
    """Symmetric banded Toeplitz matrix implementing a 1-D 'same' zero-padded
    cross-correlation with the 11-tap Gaussian: (A @ x)[i] = sum_d g[d+P]*x[i+d]."""
    m = np.zeros((n, n), dtype=np.float32)
    for d in range(-_P, _P + 1):
        w = float(_G1D[d + _P])
        i0 = max(0, -d)
        i1 = min(n, n - d)
        if i1 > i0:
            idx = np.arange(i0, i1)
            m[idx, idx + d] = w
    return m


def _ssim_block_kernel(a_ref, b_ref, x1_ref, x2_ref, sums_ref):
    # a_ref : (cb*H, cb*H) block-diagonal left band matrix  (I_cb ⊗ A_H)
    # b_ref : (W, W)       right band matrix
    # x1_ref/x2_ref : (cb, H, W) blocks of planes (original input dtype)
    # sums_ref : (cb, 1, 1) per-plane sums of the SSIM map
    cb, H, W = x1_ref.shape
    M = cb * H
    a = a_ref[...]
    b = b_ref[...]

    x1 = x1_ref[...].astype(jnp.float32).reshape(M, W)
    x2 = x2_ref[...].astype(jnp.float32).reshape(M, W)

    # Fused right pass: all 5 conv operands, all planes, one big MXU matmul.
    ops = jnp.concatenate([x1, x2, x1 * x1, x2 * x2, x1 * x2], axis=0)  # (5M, W)
    t = jnp.dot(ops, b, preferred_element_type=jnp.float32)             # (5M, W)

    # Left pass: block-diagonal band applies the H-axis Gaussian per plane;
    # one (cb*H, cb*H) @ (cb*H, W) matmul per conv quantity (5 total).
    def left(q):
        return jnp.dot(a, t[q * M:(q + 1) * M], preferred_element_type=jnp.float32)

    mu1 = left(0)
    mu2 = left(1)
    e11 = left(2)
    e22 = left(3)
    e12 = left(4)

    mu1_sq = mu1 * mu1
    mu2_sq = mu2 * mu2
    mu1_mu2 = mu1 * mu2
    sigma1_sq = e11 - mu1_sq
    sigma2_sq = e22 - mu2_sq
    sigma12 = e12 - mu1_mu2

    num = (2.0 * mu1_mu2 + C1) * (2.0 * sigma12 + C2)
    den = (mu1_sq + mu2_sq + C1) * (sigma1_sq + sigma2_sq + C2)

    # EUP approximate reciprocal + two Newton refinements (cheap VALU filler);
    # error is far below the 2e-4 tolerance and C1/C2 keep den away from zero.
    r = pl.reciprocal(den, approx=True)
    r = r * (2.0 - den * r)
    r = r * (2.0 - den * r)
    smap = num * r                                   # (cb*H, W)

    # In-kernel per-plane reduction (no HBM round-trip of the SSIM map).
    s = jnp.sum(smap.reshape(cb, H, W), axis=2, keepdims=True)  # (cb, H, 1)
    sums_ref[...] = jnp.sum(s, axis=1, keepdims=True)           # (cb, 1, 1)


def _vmem_params():
    """Generation-aware VMEM budget (block sizing) and scoped limit."""
    cap = 64 * 1024 * 1024  # conservative fallback = v7x physical VMEM
    try:
        cap = int(pltpu.get_tpu_info().vmem_capacity_bytes)
    except Exception:
        pass
    budget = max(8 << 20, min(int(cap * 0.40), 48 << 20))
    limit = max(32 << 20, min(int(cap * 0.75), 96 << 20))
    return budget, limit


def _planes_per_block(nc, H, W, itemsize, budget):
    """How many (H,W) planes per grid step, within the VMEM budget.

    Also caps cb*H at 512 so the block-diagonal left band matrix stays <= 1 MiB
    and its extra (mostly-zero) MXU work stays bounded.
    """
    # TODO(synk): fall back to H-strip tiling with a 2P halo for H,W >~ 1k.
    best = 1
    for cb in range(1, min(nc, 64) + 1):
        if cb > 1 and cb * H > 512:
            break
        a_big = 2 * (cb * H) * (cb * H) * 4        # block-diag band (dbl-buffered)
        b_mat = 2 * W * W * 4                      # right band (dbl-buffered)
        io = 2 * 2 * cb * H * W * itemsize         # x1 + x2 (dbl-buffered)
        live = 26 * cb * H * W * 4                 # f32 temporaries in the kernel
        if a_big + b_mat + io + live > budget and cb > 1:
            break
        best = cb
    return int(best)


@partial(jax.jit, static_argnames=("size_average",))
def ssim(img1, img2, size_average=True):
    """Equivalent of SSIM(window_size=11, size_average=...).forward(img1, img2)."""
    N, C, H, W = img1.shape
    nc = N * C

    # Keep the original dtype on the HBM->VMEM path; the kernel casts to f32.
    x1 = img1.reshape(nc, H, W)
    x2 = img2.reshape(nc, H, W)

    budget, vmem_limit = _vmem_params()
    cb = _planes_per_block(nc, H, W, jnp.dtype(img1.dtype).itemsize, budget)
    num_blocks = pl.cdiv(nc, cb)
    nc_pad = num_blocks * cb
    if nc_pad != nc:
        # Padded zero planes produce smap == 1; their sums are sliced off below.
        pad = nc_pad - nc
        x1 = jnp.pad(x1, ((0, pad), (0, 0), (0, 0)))
        x2 = jnp.pad(x2, ((0, pad), (0, 0), (0, 0)))

    a_h = _band_matrix(H)                                             # (H, H)
    a_big = jnp.asarray(
        np.kron(np.eye(cb, dtype=np.float32), a_h).astype(np.float32))  # (cb*H, cb*H)
    b_w = jnp.asarray(_band_matrix(W))                                # (W, W)

    sums = pl.pallas_call(
        _ssim_block_kernel,
        out_shape=jax.ShapeDtypeStruct((nc_pad, 1, 1), jnp.float32),
        grid_spec=pltpu.PrefetchScalarGridSpec(
            num_scalar_prefetch=0,
            grid=(num_blocks,),
            in_specs=[
                pl.BlockSpec((cb * H, cb * H), lambda i: (0, 0)),   # resident band
                pl.BlockSpec((W, W), lambda i: (0, 0)),             # resident band
                pl.BlockSpec((cb, H, W), lambda i: (i, 0, 0)),
                pl.BlockSpec((cb, H, W), lambda i: (i, 0, 0)),
            ],
            out_specs=pl.BlockSpec((cb, 1, 1), lambda i: (i, 0, 0)),
        ),
        compiler_params=pltpu.CompilerParams(
            dimension_semantics=("parallel",),
            vmem_limit_bytes=vmem_limit,
        ),
    )(a_big, b_w, x1, x2)

    plane_sums = sums.reshape(nc_pad)[:nc].reshape(N, C)
    hw = jnp.float32(H * W)
    if size_average:
        result = jnp.sum(plane_sums) / (hw * N * C)          # scalar, like .mean()
    else:
        result = jnp.sum(plane_sums, axis=1) / (hw * C)      # per-batch mean
    return result.astype(img1.dtype)


# ---- pure-JAX reference (for correctness check only) ----
def _ssim_ref(img1, img2, size_average=True):
    N, C, H, W = img1.shape
    K = WINDOW_SIZE
    P = K // 2
    window = jnp.broadcast_to(jnp.asarray(_W2D), (C, 1, K, K))

    def conv(x):
        return jax.lax.conv_general_dilated(
            x, window, (1, 1), [(P, P), (P, P)],
            dimension_numbers=("NCHW", "OIHW", "NCHW"),
            feature_group_count=C)

    mu1, mu2 = conv(img1), conv(img2)
    mu1_sq, mu2_sq, mu1_mu2 = mu1 ** 2, mu2 ** 2, mu1 * mu2
    s1 = conv(img1 * img1) - mu1_sq
    s2 = conv(img2 * img2) - mu2_sq
    s12 = conv(img1 * img2) - mu1_mu2
    m = (2 * mu1_mu2 + C1) * (2 * s12 + C2) / ((mu1_sq + mu2_sq + C1) * (s1 + s2 + C2))
    return jnp.mean(m) if size_average else jnp.mean(m, axis=(1, 2, 3))


if __name__ == "__main__":
    key = jax.random.PRNGKey(0)
    k1, k2 = jax.random.split(key)
    img1 = jax.random.uniform(k1, (2, 4, 16, 16), dtype=jnp.float32)
    img2 = jax.random.uniform(k2, (2, 4, 16, 16), dtype=jnp.float32)

    out = ssim(img1, img2, size_average=True)
    jax.block_until_ready(out)
    ref = _ssim_ref(img1, img2, size_average=True)
    np.testing.assert_allclose(np.asarray(out), np.asarray(ref), rtol=2e-4, atol=2e-4)

    out_b = ssim(img1, img2, size_average=False)
    jax.block_until_ready(out_b)
    ref_b = _ssim_ref(img1, img2, size_average=False)
    np.testing.assert_allclose(np.asarray(out_b), np.asarray(ref_b), rtol=2e-4, atol=2e-4)

    print("KERNEL_OK")
</pallas_src>

<mosaic_0001>
module attributes {stable_mosaic.version = 11 : i64} {
  func.func @_ssim_block_kernel(%arg0: i32, %arg1: memref<128x128xf32, #tpu.memory_space<vmem>>, %arg2: memref<16x16xf32, #tpu.memory_space<vmem>>, %arg3: memref<8x16x16xf32, #tpu.memory_space<vmem>>, %arg4: memref<8x16x16xf32, #tpu.memory_space<vmem>>, %arg5: memref<8x1x1xf32, #tpu.memory_space<vmem>>) attributes {dimension_semantics = [#tpu.dimension_semantics<parallel>], iteration_bounds = array<i64: 1>, scalar_prefetch = 0 : i64, scratch_operands = 0 : i64, tpu.core_type = #tpu.core_type<tc>, window_params = [{pipeline_mode = #tpu.pipeline_mode<synchronous>, transform_indices = @transform_0, window_bounds = array<i64: 128, 128>}, {pipeline_mode = #tpu.pipeline_mode<synchronous>, transform_indices = @transform_1, window_bounds = array<i64: 16, 16>}, {transform_indices = @transform_2, window_bounds = array<i64: 8, 16, 16>}, {transform_indices = @transform_3, window_bounds = array<i64: 8, 16, 16>}, {transform_indices = @transform_4, window_bounds = array<i64: 8, 1, 1>}]} {
    %c0 = arith.constant 0 : index
    %c0_0 = arith.constant 0 : index
    %0 = vector.load %arg1[%c0, %c0_0] : memref<128x128xf32, #tpu.memory_space<vmem>>, vector<128x128xf32>
    %c0_1 = arith.constant 0 : index
    %c0_2 = arith.constant 0 : index
    %1 = vector.load %arg2[%c0_1, %c0_2] : memref<16x16xf32, #tpu.memory_space<vmem>>, vector<16x16xf32>
    %c0_3 = arith.constant 0 : index
    %c0_4 = arith.constant 0 : index
    %c0_5 = arith.constant 0 : index
    %2 = vector.load %arg3[%c0_3, %c0_4, %c0_5] : memref<8x16x16xf32, #tpu.memory_space<vmem>>, vector<8x16x16xf32>
    %3 = vector.shape_cast %2 : vector<8x16x16xf32> to vector<128x16xf32>
    %c0_6 = arith.constant 0 : index
    %c0_7 = arith.constant 0 : index
    %c0_8 = arith.constant 0 : index
    %4 = vector.load %arg4[%c0_6, %c0_7, %c0_8] : memref<8x16x16xf32, #tpu.memory_space<vmem>>, vector<8x16x16xf32>
    %5 = vector.shape_cast %4 : vector<8x16x16xf32> to vector<128x16xf32>
    %6 = arith.mulf %3, %3 : vector<128x16xf32>
    %7 = arith.mulf %5, %5 : vector<128x16xf32>
    %8 = arith.mulf %3, %5 : vector<128x16xf32>
    %9 = tpu.concatenate %3, %5, %6, %7, %8 in 0 : vector<128x16xf32>, vector<128x16xf32>, vector<128x16xf32>, vector<128x16xf32>, vector<128x16xf32> -> vector<640x16xf32>
    %cst = arith.constant dense<0.000000e+00> : vector<640x16xf32>
    %10 = tpu.matmul %9, %1, %cst {dimension_numbers = #tpu.dot_dimension_numbers<[1], [0], [0], [1], [0, 0, 1, 1], [], []>} : vector<640x16xf32>, vector<16x16xf32>, vector<640x16xf32> -> vector<640x16xf32>
    %11 = vector.extract_strided_slice %10 {offsets = [0, 0], sizes = [128, 16], strides = [1, 1]} : vector<640x16xf32> to vector<128x16xf32>
    %cst_9 = arith.constant dense<0.000000e+00> : vector<128x16xf32>
    %12 = tpu.matmul %0, %11, %cst_9 {dimension_numbers = #tpu.dot_dimension_numbers<[1], [0], [0], [1], [0, 0, 1, 1], [], []>} : vector<128x128xf32>, vector<128x16xf32>, vector<128x16xf32> -> vector<128x16xf32>
    %13 = vector.extract_strided_slice %10 {offsets = [128, 0], sizes = [128, 16], strides = [1, 1]} : vector<640x16xf32> to vector<128x16xf32>
    %cst_10 = arith.constant dense<0.000000e+00> : vector<128x16xf32>
    %14 = tpu.matmul %0, %13, %cst_10 {dimension_numbers = #tpu.dot_dimension_numbers<[1], [0], [0], [1], [0, 0, 1, 1], [], []>} : vector<128x128xf32>, vector<128x16xf32>, vector<128x16xf32> -> vector<128x16xf32>
    %15 = vector.extract_strided_slice %10 {offsets = [256, 0], sizes = [128, 16], strides = [1, 1]} : vector<640x16xf32> to vector<128x16xf32>
    %cst_11 = arith.constant dense<0.000000e+00> : vector<128x16xf32>
    %16 = tpu.matmul %0, %15, %cst_11 {dimension_numbers = #tpu.dot_dimension_numbers<[1], [0], [0], [1], [0, 0, 1, 1], [], []>} : vector<128x128xf32>, vector<128x16xf32>, vector<128x16xf32> -> vector<128x16xf32>
    %17 = vector.extract_strided_slice %10 {offsets = [384, 0], sizes = [128, 16], strides = [1, 1]} : vector<640x16xf32> to vector<128x16xf32>
    %cst_12 = arith.constant dense<0.000000e+00> : vector<128x16xf32>
    %18 = tpu.matmul %0, %17, %cst_12 {dimension_numbers = #tpu.dot_dimension_numbers<[1], [0], [0], [1], [0, 0, 1, 1], [], []>} : vector<128x128xf32>, vector<128x16xf32>, vector<128x16xf32> -> vector<128x16xf32>
    %19 = vector.extract_strided_slice %10 {offsets = [512, 0], sizes = [128, 16], strides = [1, 1]} : vector<640x16xf32> to vector<128x16xf32>
    %cst_13 = arith.constant dense<0.000000e+00> : vector<128x16xf32>
    %20 = tpu.matmul %0, %19, %cst_13 {dimension_numbers = #tpu.dot_dimension_numbers<[1], [0], [0], [1], [0, 0, 1, 1], [], []>} : vector<128x128xf32>, vector<128x16xf32>, vector<128x16xf32> -> vector<128x16xf32>
    %21 = arith.mulf %12, %12 : vector<128x16xf32>
    %22 = arith.mulf %14, %14 : vector<128x16xf32>
    %23 = arith.mulf %12, %14 : vector<128x16xf32>
    %24 = arith.subf %16, %21 : vector<128x16xf32>
    %25 = arith.subf %18, %22 : vector<128x16xf32>
    %26 = arith.subf %20, %23 : vector<128x16xf32>
    %cst_14 = arith.constant 2.000000e+00 : f32
    %27 = vector.broadcast %cst_14 : f32 to vector<128x16xf32>
    %28 = arith.mulf %27, %23 : vector<128x16xf32>
    %cst_15 = arith.constant 9.99999974E-5 : f32
    %29 = vector.broadcast %cst_15 : f32 to vector<128x16xf32>
    %30 = arith.addf %28, %29 : vector<128x16xf32>
    %cst_16 = arith.constant 2.000000e+00 : f32
    %31 = vector.broadcast %cst_16 : f32 to vector<128x16xf32>
    %32 = arith.mulf %31, %26 : vector<128x16xf32>
    %cst_17 = arith.constant 8.99999984E-4 : f32
    %33 = vector.broadcast %cst_17 : f32 to vector<128x16xf32>
    %34 = arith.addf %32, %33 : vector<128x16xf32>
    %35 = arith.mulf %30, %34 : vector<128x16xf32>
    %36 = arith.addf %21, %22 : vector<128x16xf32>
    %cst_18 = arith.constant 9.99999974E-5 : f32
    %37 = vector.broadcast %cst_18 : f32 to vector<128x16xf32>
    %38 = arith.addf %36, %37 : vector<128x16xf32>
    %39 = arith.addf %24, %25 : vector<128x16xf32>
    %cst_19 = arith.constant 8.99999984E-4 : f32
    %40 = vector.broadcast %cst_19 : f32 to vector<128x16xf32>
    %41 = arith.addf %39, %40 : vector<128x16xf32>
    %42 = arith.mulf %38, %41 : vector<128x16xf32>
    %43 = tpu.reciprocal %42 {approx = true} : vector<128x16xf32> -> vector<128x16xf32>
    %44 = arith.mulf %42, %43 : vector<128x16xf32>
    %cst_20 = arith.constant 2.000000e+00 : f32
    %45 = vector.broadcast %cst_20 : f32 to vector<128x16xf32>
    %46 = arith.subf %45, %44 : vector<128x16xf32>
    %47 = arith.mulf %43, %46 : vector<128x16xf32>
    %48 = arith.mulf %42, %47 : vector<128x16xf32>
    %cst_21 = arith.constant 2.000000e+00 : f32
    %49 = vector.broadcast %cst_21 : f32 to vector<128x16xf32>
    %50 = arith.subf %49, %48 : vector<128x16xf32>
    %51 = arith.mulf %47, %50 : vector<128x16xf32>
    %52 = arith.mulf %35, %51 : vector<128x16xf32>
    %53 = vector.shape_cast %52 : vector<128x16xf32> to vector<8x16x16xf32>
    %cst_22 = arith.constant dense<0.000000e+00> : vector<8x16xf32>
    %54 = vector.multi_reduction <add>, %53, %cst_22 [2] : vector<8x16x16xf32> to vector<8x16xf32>
    %55 = vector.shape_cast %54 : vector<8x16xf32> to vector<8x16x1xf32>
    %cst_23 = arith.constant dense<0.000000e+00> : vector<8x1xf32>
    %56 = vector.multi_reduction <add>, %55, %cst_23 [1] : vector<8x16x1xf32> to vector<8x1xf32>
    %57 = vector.shape_cast %56 : vector<8x1xf32> to vector<8x1x1xf32>
    %c0_24 = arith.constant 0 : index
    %c0_25 = arith.constant 0 : index
    %c0_26 = arith.constant 0 : index
    %58 = vector.load %arg5[%c0_24, %c0_25, %c0_26] : memref<8x1x1xf32, #tpu.memory_space<vmem>>, vector<8x1x1xf32>
    tpu.vector_store %arg5[%c0_24, %c0_25, %c0_26], %57 {strides = array<i32>} : memref<8x1x1xf32, #tpu.memory_space<vmem>>, vector<8x1x1xf32>,
    return
  }
  func.func @transform_0(%arg0: i32) -> (i32, i32) {
    %c0_i32 = arith.constant 0 : i32
    %c0_i32_0 = arith.constant 0 : i32
    %c0_i32_1 = arith.constant 0 : i32
    return %c0_i32, %c0_i32_0 : i32, i32
  }
  func.func @transform_1(%arg0: i32) -> (i32, i32) {
    %c0_i32 = arith.constant 0 : i32
    %c0_i32_0 = arith.constant 0 : i32
    %c0_i32_1 = arith.constant 0 : i32
    return %c0_i32, %c0_i32_0 : i32, i32
  }
  func.func @transform_2(%arg0: i32) -> (i32, i32, i32) {
    %c0_i32 = arith.constant 0 : i32
    %c0_i32_0 = arith.constant 0 : i32
    %c0_i32_1 = arith.constant 0 : i32
    return %arg0, %c0_i32, %c0_i32_0 : i32, i32, i32
  }
  func.func @transform_3(%arg0: i32) -> (i32, i32, i32) {
    %c0_i32 = arith.constant 0 : i32
    %c0_i32_0 = arith.constant 0 : i32
    %c0_i32_1 = arith.constant 0 : i32
    return %arg0, %c0_i32, %c0_i32_0 : i32, i32, i32
  }
  func.func @transform_4(%arg0: i32) -> (i32, i32, i32) {
    %c0_i32 = arith.constant 0 : i32
    %c0_i32_0 = arith.constant 0 : i32
    %c0_i32_1 = arith.constant 0 : i32
    return %arg0, %c0_i32, %c0_i32_0 : i32, i32, i32
  }
}

</mosaic_0001>

<llo_original>
// kernel: ssim.1
$region0: #{ssim.1}
  #allocation0 [shape = 'u32[]', space=smem, size = 0x4, offset = 0x4, fixed_abs, tag = 'smem constant byte address 0x4 - core index']
  #allocation1 [shape = 'u32[144,128]{1,0:T(1,128)}', space=vmem, size = 0x12000, scoped, tag = 'internal scratch']
  %s0 = inlined_call_operand.hbm [shape: f32[128,128], index: 0, kind: input, shape index: {}]
  %s1 = inlined_call_operand.vmem [shape: f32[16,16], index: 1, kind: input, shape index: {}]
  %s2 = inlined_call_operand.hbm [shape: f32[8,16,16], index: 2, kind: input, shape index: {}]
  %s3 = inlined_call_operand.hbm [shape: f32[8,16,16], index: 3, kind: input, shape index: {}]
  %s4 = inlined_call_operand.vmem [shape: f32[8,1,1], index: 4, kind: output, shape index: {}]
  %s5 = sld [smem:[#allocation0]]
  $region38: #{ssim.1} parent=0
    _
  %s7 = ssub.s32 1, %s5
  %s8 = scalar_select 0, %s7, %s5
  $region1: #{ssim.1} parent=0
    #allocation2 [shape = 'u8[65536]{0}', space=vmem, size = 0x10000, scoped, tag = 'input window, operand 0, single buffered']
    #allocation3 [shape = 's32[1]{0}', space=sflag, size = 0x4, scoped, tag = 'scoped memory for ssim.1']
    #allocation4 [shape = 'u8[65536]{0}', space=vmem, size = 0x10000, scoped, tag = 'input window, operand 2, single buffered']
    #allocation5 [shape = 's32[1]{0}', space=sflag, size = 0x4, scoped, tag = 'scoped memory for ssim.1']
    #allocation6 [shape = 'u8[65536]{0}', space=vmem, size = 0x10000, scoped, tag = 'input window, operand 3, single buffered']
    %9 = vsyncpa [#allocation3], 0
    %10 = vsyncpa [#allocation5], 0
    // Predicated region
    $region2: #{ssim.1} parent=1 // pred_check
      _
    $region3: #{ssim.1} parent=1 // pred_check_branch
      %12 = sbr.rel (0) target = $region5
    $region4: #{ssim.1} parent=1 // pred_region
      %s14 = ssub.s32 2048, 2048
      %15 = vsyncadd [#allocation3], %s14
      %s16 = sshll.u32 [#allocation2], 4
      %s17 = int_to_ptr.vmem [resolvable:$true] %s16
      %22 = dma.hbm_to_vmem [thread:$0]  %s0, 2048, %s17, [#allocation3], 128, 128, 8
    $region5: #{ssim.1} parent=1 // pred_fallthru
      _
    // Predicated region
    $region6: #{ssim.1} parent=1 // pred_check
      _
    $region7: #{ssim.1} parent=1 // pred_check_branch
      %24 = sbr.rel (0) target = $region9
    $region8: #{ssim.1} parent=1 // pred_region
      _
    $region9: #{ssim.1} parent=1 // pred_fallthru
      _
    // Predicated region
    $region10: #{ssim.1} parent=1 // pred_check
      _
    $region11: #{ssim.1} parent=1 // pred_check_branch
      %26 = sbr.rel (0) target = $region13
    $region12: #{ssim.1} parent=1 // pred_region
      %s28 = ssub.s32 2048, 2048
      %29 = vsyncadd [#allocation5], %s28
      %s30 = sshll.u32 [#allocation4], 4
      %s31 = int_to_ptr.vmem [resolvable:$true] %s30
      %36 = dma.hbm_to_vmem [thread:$0]  %s2, 2048, %s31, [#allocation5], 128, 128, 8
    $region13: #{ssim.1} parent=1 // pred_fallthru
      _
    // Predicated region
    $region14: #{ssim.1} parent=1 // pred_check
      _
    $region15: #{ssim.1} parent=1 // pred_check_branch
      %38 = sbr.rel (0) target = $region17
    $region16: #{ssim.1} parent=1 // pred_region
      %s40 = ssub.s32 2048, 2048
      %41 = vsyncadd [#allocation5], %s40
      %s42 = sshll.u32 [#allocation6], 4
      %s43 = int_to_ptr.vmem [resolvable:$true] %s42
      %48 = dma.hbm_to_vmem [thread:$0]  %s3, 2048, %s43, [#allocation5], 128, 128, 8
    $region17: #{ssim.1} parent=1 // pred_fallthru
      _
    // Predicated region
    $region18: #{ssim.1} parent=1 // pred_check
      _
    $region19: #{ssim.1} parent=1 // pred_check_branch
      %50 = sbr.rel (0) target = $region21
    $region20: #{ssim.1} parent=1 // pred_region
      %51 = dma.done [#allocation3], 2048
    $region21: #{ssim.1} parent=1 // pred_fallthru
      _
    // Predicated region
    $region22: #{ssim.1} parent=1 // pred_check
      _
    $region23: #{ssim.1} parent=1 // pred_check_branch
      %53 = sbr.rel (0) target = $region25
    $region24: #{ssim.1} parent=1 // pred_region
      %54 = dma.done [#allocation5], 2048
    $region25: #{ssim.1} parent=1 // pred_fallthru
      _
    // Predicated region
    $region26: #{ssim.1} parent=1 // pred_check
      _
    $region27: #{ssim.1} parent=1 // pred_check_branch
      %56 = sbr.rel (0) target = $region29
    $region28: #{ssim.1} parent=1 // pred_region
      %57 = dma.done [#allocation5], 2048
    $region29: #{ssim.1} parent=1 // pred_fallthru
      _
    %v58 = vld [vmem:[#allocation2] sm:$0xff]
    %v59 = vld [vmem:[#allocation2 + $0x8] sm:$0xff]
    %v60 = vld [vmem:[#allocation2 + $0x10] sm:$0xff]
    %v61 = vld [vmem:[#allocation2 + $0x18] sm:$0xff]
    %v62 = vld [vmem:[#allocation2 + $0x20] sm:$0xff]
    %v63 = vld [vmem:[#allocation2 + $0x28] sm:$0xff]
    %v64 = vld [vmem:[#allocation2 + $0x30] sm:$0xff]
    %v65 = vld [vmem:[#allocation2 + $0x38] sm:$0xff]
    %v66 = vld [vmem:[#allocation2 + $0x40] sm:$0xff]
    %v67 = vld [vmem:[#allocation2 + $0x48] sm:$0xff]
    %v68 = vld [vmem:[#allocation2 + $0x50] sm:$0xff]
    %v69 = vld [vmem:[#allocation2 + $0x58] sm:$0xff]
    %v70 = vld [vmem:[#allocation2 + $0x60] sm:$0xff]
    %v71 = vld [vmem:[#allocation2 + $0x68] sm:$0xff]
    %v72 = vld [vmem:[#allocation2 + $0x70] sm:$0xff]
    %v73 = vld [vmem:[#allocation2 + $0x78] sm:$0xff]
    %v74 = vld [vmem:[%s1] sm:$0xff]
    %v75 = vld [vmem:[%s1 + $0x8] sm:$0xff]
    %v76 = vld [vmem:[#allocation4] sm:$0xff]
    %v77 = vld [vmem:[#allocation4 + $0x8] sm:$0xff]
    %v78 = vld [vmem:[#allocation4 + $0x10] sm:$0xff]
    %v79 = vld [vmem:[#allocation4 + $0x18] sm:$0xff]
    %v80 = vld [vmem:[#allocation4 + $0x20] sm:$0xff]
    %v81 = vld [vmem:[#allocation4 + $0x28] sm:$0xff]
    %v82 = vld [vmem:[#allocation4 + $0x30] sm:$0xff]
    %v83 = vld [vmem:[#allocation4 + $0x38] sm:$0xff]
    %v84 = vld [vmem:[#allocation4 + $0x40] sm:$0xff]
    %v85 = vld [vmem:[#allocation4 + $0x48] sm:$0xff]
    %v86 = vld [vmem:[#allocation4 + $0x50] sm:$0xff]
    %v87 = vld [vmem:[#allocation4 + $0x58] sm:$0xff]
    %v88 = vld [vmem:[#allocation4 + $0x60] sm:$0xff]
    %v89 = vld [vmem:[#allocation4 + $0x68] sm:$0xff]
    %v90 = vld [vmem:[#allocation4 + $0x70] sm:$0xff]
    %v91 = vld [vmem:[#allocation4 + $0x78] sm:$0xff]
    %v92 = vld [vmem:[#allocation6] sm:$0xff]
    %v93 = vld [vmem:[#allocation6 + $0x8] sm:$0xff]
    %v94 = vld [vmem:[#allocation6 + $0x10] sm:$0xff]
    %v95 = vld [vmem:[#allocation6 + $0x18] sm:$0xff]
    %v96 = vld [vmem:[#allocation6 + $0x20] sm:$0xff]
    %v97 = vld [vmem:[#allocation6 + $0x28] sm:$0xff]
    %v98 = vld [vmem:[#allocation6 + $0x30] sm:$0xff]
    %v99 = vld [vmem:[#allocation6 + $0x38] sm:$0xff]
    %v100 = vld [vmem:[#allocation6 + $0x40] sm:$0xff]
    %v101 = vld [vmem:[#allocation6 + $0x48] sm:$0xff]
    %v102 = vld [vmem:[#allocation6 + $0x50] sm:$0xff]
    %v103 = vld [vmem:[#allocation6 + $0x58] sm:$0xff]
    %v104 = vld [vmem:[#allocation6 + $0x60] sm:$0xff]
    %v105 = vld [vmem:[#allocation6 + $0x68] sm:$0xff]
    %v106 = vld [vmem:[#allocation6 + $0x70] sm:$0xff]
    %v107 = vld [vmem:[#allocation6 + $0x78] sm:$0xff]
    %v108 = vmul.f32 %v76, %v76
    %v109 = vmul.f32 %v77, %v77
    %v110 = vmul.f32 %v78, %v78
    %v111 = vmul.f32 %v79, %v79
    %v112 = vmul.f32 %v80, %v80
    %v113 = vmul.f32 %v81, %v81
    %v114 = vmul.f32 %v82, %v82
    %v115 = vmul.f32 %v83, %v83
    %v116 = vmul.f32 %v84, %v84
    %v117 = vmul.f32 %v85, %v85
    %v118 = vmul.f32 %v86, %v86
    %v119 = vmul.f32 %v87, %v87
    %v120 = vmul.f32 %v88, %v88
    %v121 = vmul.f32 %v89, %v89
    %v122 = vmul.f32 %v90, %v90
    %v123 = vmul.f32 %v91, %v91
    %v124 = vmul.f32 %v92, %v92
    %v125 = vmul.f32 %v93, %v93
    %v126 = vmul.f32 %v94, %v94
    %v127 = vmul.f32 %v95, %v95
    %v128 = vmul.f32 %v96, %v96
    %v129 = vmul.f32 %v97, %v97
    %v130 = vmul.f32 %v98, %v98
    %v131 = vmul.f32 %v99, %v99
    %v132 = vmul.f32 %v100, %v100
    %v133 = vmul.f32 %v101, %v101
    %v134 = vmul.f32 %v102, %v102
    %v135 = vmul.f32 %v103, %v103
    %v136 = vmul.f32 %v104, %v104
    %v137 = vmul.f32 %v105, %v105
    %v138 = vmul.f32 %v106, %v106
    %v139 = vmul.f32 %v107, %v107
    %v140 = vmul.f32 %v76, %v92
    %v141 = vmul.f32 %v77, %v93
    %v142 = vmul.f32 %v78, %v94
    %v143 = vmul.f32 %v79, %v95
    %v144 = vmul.f32 %v80, %v96
    %v145 = vmul.f32 %v81, %v97
    %v146 = vmul.f32 %v82, %v98
    %v147 = vmul.f32 %v83, %v99
    %v148 = vmul.f32 %v84, %v100
    %v149 = vmul.f32 %v85, %v101
    %v150 = vmul.f32 %v86, %v102
    %v151 = vmul.f32 %v87, %v103
    %v152 = vmul.f32 %v88, %v104
    %v153 = vmul.f32 %v89, %v105
    %v154 = vmul.f32 %v90, %v106
    %v155 = vmul.f32 %v91, %v107
    %vm156 = vcmask 130048
    %v158 = vsel %vm156, %v76, 0
    %v161 = vsel %vm156, %v77, 0
    %v164 = vsel %vm156, %v78, 0
    %v167 = vsel %vm156, %v79, 0
    %v170 = vsel %vm156, %v80, 0
    %v173 = vsel %vm156, %v81, 0
    %v176 = vsel %vm156, %v82, 0
    %v179 = vsel %vm156, %v83, 0
    %v182 = vsel %vm156, %v84, 0
    %v185 = vsel %vm156, %v85, 0
    %v188 = vsel %vm156, %v86, 0
    %v191 = vsel %vm156, %v87, 0
    %v194 = vsel %vm156, %v88, 0
    %v197 = vsel %vm156, %v89, 0
    %v200 = vsel %vm156, %v90, 0
    %v203 = vsel %vm156, %v91, 0
    %v206 = vsel %vm156, %v92, 0
    %v209 = vsel %vm156, %v93, 0
    %v212 = vsel %vm156, %v94, 0
    %v215 = vsel %vm156, %v95, 0
    %v218 = vsel %vm156, %v96, 0
    %v221 = vsel %vm156, %v97, 0
    %v224 = vsel %vm156, %v98, 0
    %v227 = vsel %vm156, %v99, 0
    %v230 = vsel %vm156, %v100, 0
    %v233 = vsel %vm156, %v101, 0
    %v236 = vsel %vm156, %v102, 0
    %v239 = vsel %vm156, %v103, 0
    %v242 = vsel %vm156, %v104, 0
    %v245 = vsel %vm156, %v105, 0
    %v248 = vsel %vm156, %v106, 0
    %v251 = vsel %vm156, %v107, 0
    %v254 = vsel %vm156, %v108, 0
    %v257 = vsel %vm156, %v109, 0
    %v260 = vsel %vm156, %v110, 0
    %v263 = vsel %vm156, %v111, 0
    %v266 = vsel %vm156, %v112, 0
    %v269 = vsel %vm156, %v113, 0
    %v272 = vsel %vm156, %v114, 0
    %v275 = vsel %vm156, %v115, 0
    %v278 = vsel %vm156, %v116, 0
    %v281 = vsel %vm156, %v117, 0
    %v284 = vsel %vm156, %v118, 0
    %v287 = vsel %vm156, %v119, 0
    %v290 = vsel %vm156, %v120, 0
    %v293 = vsel %vm156, %v121, 0
    %v296 = vsel %vm156, %v122, 0
    %v299 = vsel %vm156, %v123, 0
    %v302 = vsel %vm156, %v124, 0
    %v305 = vsel %vm156, %v125, 0
    %v308 = vsel %vm156, %v126, 0
    %v311 = vsel %vm156, %v127, 0
    %v314 = vsel %vm156, %v128, 0
    %v317 = vsel %vm156, %v129, 0
    %v320 = vsel %vm156, %v130, 0
    %v323 = vsel %vm156, %v131, 0
    %v326 = vsel %vm156, %v132, 0
    %v329 = vsel %vm156, %v133, 0
    %v332 = vsel %vm156, %v134, 0
    %v335 = vsel %vm156, %v135, 0
    %v338 = vsel %vm156, %v136, 0
    %v341 = vsel %vm156, %v137, 0
    %v344 = vsel %vm156, %v138, 0
    %v347 = vsel %vm156, %v139, 0
    %v350 = vsel %vm156, %v140, 0
    %v353 = vsel %vm156, %v141, 0
    %v356 = vsel %vm156, %v142, 0
    %v359 = vsel %vm156, %v143, 0
    %v362 = vsel %vm156, %v144, 0
    %v365 = vsel %vm156, %v145, 0
    %v368 = vsel %vm156, %v146, 0
    %v371 = vsel %vm156, %v147, 0
    %v374 = vsel %vm156, %v148, 0
    %v377 = vsel %vm156, %v149, 0
    %v380 = vsel %vm156, %v150, 0
    %v383 = vsel %vm156, %v151, 0
    %v386 = vsel %vm156, %v152, 0
    %v389 = vsel %vm156, %v153, 0
    %v392 = vsel %vm156, %v154, 0
    %v395 = vsel %vm156, %v155, 0
    %397 = vmatprep.subr.mxu0 0.0
    %398 = vmatpush1.msra.mxu0 %v74
    %399 = vmatprep.subr.mxu0 0.0
    %400 = vmatpush1.msra.mxu0 %v75
    %401 = vmatprep.subr.mxu0 0.0
    %402 = vmatpush1.msra.mxu0 0.0
    %403 = vmatprep.subr.mxu0 0.0
    %404 = vmatpush1.msra.mxu0 0.0
    %405 = vmatprep.subr.mxu0 0.0
    %406 = vmatpush1.msra.mxu0 0.0
    %407 = vmatprep.subr.mxu0 0.0
    %408 = vmatpush1.msra.mxu0 0.0
    %409 = vmatprep.subr.mxu0 0.0
    %410 = vmatpush1.msra.mxu0 0.0
    %411 = vmatprep.subr.mxu0 0.0
    %412 = vmatpush1.msra.mxu0 0.0
    %413 = vmatprep.subr.mxu0 0.0
    %414 = vmatpush1.msra.mxu0 0.0
    %415 = vmatprep.subr.mxu0 0.0
    %416 = vmatpush1.msra.mxu0 0.0
    %417 = vmatprep.subr.mxu0 0.0
    %418 = vmatpush1.msra.mxu0 0.0
    %419 = vmatprep.subr.mxu0 0.0
    %420 = vmatpush1.msra.mxu0 0.0
    %421 = vmatprep.subr.mxu0 0.0
    %422 = vmatpush1.msra.mxu0 0.0
    %423 = vmatprep.subr.mxu0 0.0
    %424 = vmatpush1.msra.mxu0 0.0
    %425 = vmatprep.subr.mxu0 0.0
    %426 = vmatpush1.msra.mxu0 0.0
    %427 = vmatprep.subr.mxu0 0.0
    %428 = vmatpush1.msra.mxu0 0.0
    %429 = vmatprep.subr.mxu0 0.0
    %430 = vmatpush1.msra.mxu0 0.0
    %431 = vmatprep.subr.mxu0 0.0
    %432 = vmatpush1.msra.mxu0 0.0
    %433 = vmatprep.subr.mxu0 0.0
    %434 = vmatpush1.msra.mxu0 0.0
    %435 = vmatprep.subr.mxu0 0.0
    %436 = vmatpush1.msra.mxu0 0.0
    %437 = vmatprep.subr.mxu0 0.0
    %438 = vmatpush1.msra.mxu0 0.0
    %439 = vmatprep.subr.mxu0 0.0
    %440 = vmatpush1.msra.mxu0 0.0
    %441 = vmatprep.subr.mxu0 0.0
    %442 = vmatpush1.msra.mxu0 0.0
    %443 = vmatprep.subr.mxu0 0.0
    %444 = vmatpush1.msra.mxu0 0.0
    %445 = vmatprep.subr.mxu0 0.0
    %446 = vmatpush1.msra.mxu0 0.0
    %447 = vmatprep.subr.mxu0 0.0
    %448 = vmatpush1.msra.mxu0 0.0
    %449 = vmatprep.subr.mxu0 0.0
    %450 = vmatpush1.msra.mxu0 0.0
    %451 = vmatprep.subr.mxu0 0.0
    %452 = vmatpush1.msra.mxu0 0.0
    %453 = vmatprep.subr.mxu0 0.0
    %454 = vmatpush1.msra.mxu0 0.0
    %455 = vmatprep.subr.mxu0 0.0
    %456 = vmatpush1.msra.mxu0 0.0
    %457 = vmatprep.subr.mxu0 0.0
    %458 = vmatpush1.msra.mxu0 0.0
    %459 = vmatprep.subr.mxu0 0.0
    %460 = vmatpush1.msra.mxu0 0.0
    %461 = vmatprep.mubr.f32.mxu0 0.0
    %462 = vmatmul.mubr.f32.gmra.mrb[0].mxu0 %v158
    %v463 = vpop.f32.mrb[0].mxu0
    %v464 = vadd.f32 0.0, %v463
    %v465 = vpop.f32.mrb[0].mxu0
    %466 = vmatprep.mubr.f32.mxu0 0.0
    %467 = vmatmul.mubr.f32.gmra.mrb[0].mxu0 %v161
    %v468 = vpop.f32.mrb[0].mxu0
    %v469 = vadd.f32 0.0, %v468
    %v470 = vpop.f32.mrb[0].mxu0
    %471 = vmatprep.mubr.f32.mxu0 0.0
    %472 = vmatmul.mubr.f32.gmra.mrb[0].mxu0 %v164
    %v473 = vpop.f32.mrb[0].mxu0
    %v474 = vadd.f32 0.0, %v473
    %v475 = vpop.f32.mrb[0].mxu0
    %476 = vmatprep.mubr.f32.mxu0 0.0
    %477 = vmatmul.mubr.f32.gmra.mrb[0].mxu0 %v167
    %v478 = vpop.f32.mrb[0].mxu0
    %v479 = vadd.f32 0.0, %v478
    %v480 = vpop.f32.mrb[0].mxu0
    %481 = vmatprep.mubr.f32.mxu0 0.0
    %482 = vmatmul.mubr.f32.gmra.mrb[0].mxu0 %v170
    %v483 = vpop.f32.mrb[0].mxu0
    %v484 = vadd.f32 0.0, %v483
    %v485 = vpop.f32.mrb[0].mxu0
    %486 = vmatprep.mubr.f32.mxu0 0.0
    %487 = vmatmul.mubr.f32.gmra.mrb[0].mxu0 %v173
    %v488 = vpop.f32.mrb[0].mxu0
    %v489 = vadd.f32 0.0, %v488
    %v490 = vpop.f32.mrb[0].mxu0
    %491 = vmatprep.mubr.f32.mxu0 0.0
    %492 = vmatmul.mubr.f32.gmra.mrb[0].mxu0 %v176
    %v493 = vpop.f32.mrb[0].mxu0
    %v494 = vadd.f32 0.0, %v493
    %v495 = vpop.f32.mrb[0].mxu0
    %496 = vmatprep.mubr.f32.mxu0 0.0
    %497 = vmatmul.mubr.f32.gmra.mrb[0].mxu0 %v179
    %v498 = vpop.f32.mrb[0].mxu0
    %v499 = vadd.f32 0.0, %v498
    %v500 = vpop.f32.mrb[0].mxu0
    %501 = vmatprep.mubr.f32.mxu0 0.0
    %502 = vmatmul.mubr.f32.gmra.mrb[0].mxu0 %v182
    %v503 = vpop.f32.mrb[0].mxu0
    %v504 = vadd.f32 0.0, %v503
    %v505 = vpop.f32.mrb[0].mxu0
    %506 = vmatprep.mubr.f32.mxu0 0.0
    %507 = vmatmul.mubr.f32.gmra.mrb[0].mxu0 %v185
    %v508 = vpop.f32.mrb[0].mxu0
    %v509 = vadd.f32 0.0, %v508
    %v510 = vpop.f32.mrb[0].mxu0
    %511 = vmatprep.mubr.f32.mxu0 0.0
    %512 = vmatmul.mubr.f32.gmra.mrb[0].mxu0 %v188
    %v513 = vpop.f32.mrb[0].mxu0
    %v514 = vadd.f32 0.0, %v513
    %v515 = vpop.f32.mrb[0].mxu0
    %516 = vmatprep.mubr.f32.mxu0 0.0
    %517 = vmatmul.mubr.f32.gmra.mrb[0].mxu0 %v191
    %v518 = vpop.f32.mrb[0].mxu0
    %v519 = vadd.f32 0.0, %v518
    %v520 = vpop.f32.mrb[0].mxu0
    %521 = vmatprep.mubr.f32.mxu0 0.0
    %522 = vmatmul.mubr.f32.gmra.mrb[0].mxu0 %v194
    %v523 = vpop.f32.mrb[0].mxu0
    %v524 = vadd.f32 0.0, %v523
    %v525 = vpop.f32.mrb[0].mxu0
    %526 = vmatprep.mubr.f32.mxu0 0.0
    %527 = vmatmul.mubr.f32.gmra.mrb[0].mxu0 %v197
    %v528 = vpop.f32.mrb[0].mxu0
    %v529 = vadd.f32 0.0, %v528
    %v530 = vpop.f32.mrb[0].mxu0
    %531 = vmatprep.mubr.f32.mxu0 0.0
    %532 = vmatmul.mubr.f32.gmra.mrb[0].mxu0 %v200
    %v533 = vpop.f32.mrb[0].mxu0
    %v534 = vadd.f32 0.0, %v533
    %v535 = vpop.f32.mrb[0].mxu0
    %536 = vmatprep.mubr.f32.mxu0 0.0
    %537 = vmatmul.mubr.f32.gmra.mrb[0].mxu0 %v203
    %v538 = vpop.f32.mrb[0].mxu0
    %v539 = vadd.f32 0.0, %v538
    %v540 = vpop.f32.mrb[0].mxu0
    %541 = vmatprep.mubr.f32.mxu0 0.0
    %542 = vmatmul.mubr.f32.gmra.mrb[0].mxu0 %v206
    %v543 = vpop.f32.mrb[0].mxu0
    %v544 = vadd.f32 0.0, %v543
    %v545 = vpop.f32.mrb[0].mxu0
    %546 = vmatprep.mubr.f32.mxu0 0.0
    %547 = vmatmul.mubr.f32.gmra.mrb[0].mxu0 %v209
    %v548 = vpop.f32.mrb[0].mxu0
    %v549 = vadd.f32 0.0, %v548
    %v550 = vpop.f32.mrb[0].mxu0
    %551 = vmatprep.mubr.f32.mxu0 0.0
    %552 = vmatmul.mubr.f32.gmra.mrb[0].mxu0 %v212
    %v553 = vpop.f32.mrb[0].mxu0
    %v554 = vadd.f32 0.0, %v553
    %v555 = vpop.f32.mrb[0].mxu0
    %556 = vmatprep.mubr.f32.mxu0 0.0
    %557 = vmatmul.mubr.f32.gmra.mrb[0].mxu0 %v215
    %v558 = vpop.f32.mrb[0].mxu0
    %v559 = vadd.f32 0.0, %v558
    %v560 = vpop.f32.mrb[0].mxu0
    %561 = vmatprep.mubr.f32.mxu0 0.0
    %562 = vmatmul.mubr.f32.gmra.mrb[0].mxu0 %v218
    %v563 = vpop.f32.mrb[0].mxu0
    %v564 = vadd.f32 0.0, %v563
    %v565 = vpop.f32.mrb[0].mxu0
    %566 = vmatprep.mubr.f32.mxu0 0.0
    %567 = vmatmul.mubr.f32.gmra.mrb[0].mxu0 %v221
    %v568 = vpop.f32.mrb[0].mxu0
    %v569 = vadd.f32 0.0, %v568
    %v570 = vpop.f32.mrb[0].mxu0
    %571 = vmatprep.mubr.f32.mxu0 0.0
    %572 = vmatmul.mubr.f32.gmra.mrb[0].mxu0 %v224
    %v573 = vpop.f32.mrb[0].mxu0
    %v574 = vadd.f32 0.0, %v573
    %v575 = vpop.f32.mrb[0].mxu0
    %576 = vmatprep.mubr.f32.mxu0 0.0
    %577 = vmatmul.mubr.f32.gmra.mrb[0].mxu0 %v227
    %v578 = vpop.f32.mrb[0].mxu0
    %v579 = vadd.f32 0.0, %v578
    %v580 = vpop.f32.mrb[0].mxu0
    %581 = vmatprep.mubr.f32.mxu0 0.0
    %582 = vmatmul.mubr.f32.gmra.mrb[0].mxu0 %v230
    %v583 = vpop.f32.mrb[0].mxu0
    %v584 = vadd.f32 0.0, %v583
    %v585 = vpop.f32.mrb[0].mxu0
    %586 = vmatprep.mubr.f32.mxu0 0.0
    %587 = vmatmul.mubr.f32.gmra.mrb[0].mxu0 %v233
    %v588 = vpop.f32.mrb[0].mxu0
    %v589 = vadd.f32 0.0, %v588
    %v590 = vpop.f32.mrb[0].mxu0
    %591 = vmatprep.mubr.f32.mxu0 0.0
    %592 = vmatmul.mubr.f32.gmra.mrb[0].mxu0 %v236
    %v593 = vpop.f32.mrb[0].mxu0
    %v594 = vadd.f32 0.0, %v593
    %v595 = vpop.f32.mrb[0].mxu0
    %596 = vmatprep.mubr.f32.mxu0 0.0
    %597 = vmatmul.mubr.f32.gmra.mrb[0].mxu0 %v239
    %v598 = vpop.f32.mrb[0].mxu0
    %v599 = vadd.f32 0.0, %v598
    %v600 = vpop.f32.mrb[0].mxu0
    %601 = vmatprep.mubr.f32.mxu0 0.0
    %602 = vmatmul.mubr.f32.gmra.mrb[0].mxu0 %v242
    %v603 = vpop.f32.mrb[0].mxu0
    %v604 = vadd.f32 0.0, %v603
    %v605 = vpop.f32.mrb[0].mxu0
    %606 = vmatprep.mubr.f32.mxu0 0.0
    %607 = vmatmul.mubr.f32.gmra.mrb[0].mxu0 %v245
    %v608 = vpop.f32.mrb[0].mxu0
    %v609 = vadd.f32 0.0, %v608
    %v610 = vpop.f32.mrb[0].mxu0
    %611 = vmatprep.mubr.f32.mxu0 0.0
    %612 = vmatmul.mubr.f32.gmra.mrb[0].mxu0 %v248
    %v613 = vpop.f32.mrb[0].mxu0
    %v614 = vadd.f32 0.0, %v613
    %v615 = vpop.f32.mrb[0].mxu0
    %616 = vmatprep.mubr.f32.mxu0 0.0
    %617 = vmatmul.mubr.f32.gmra.mrb[0].mxu0 %v251
    %v618 = vpop.f32.mrb[0].mxu0
    %v619 = vadd.f32 0.0, %v618
    %v620 = vpop.f32.mrb[0].mxu0
    %621 = vmatprep.mubr.f32.mxu0 0.0
    %622 = vmatmul.mubr.f32.gmra.mrb[0].mxu0 %v254
    %v623 = vpop.f32.mrb[0].mxu0
    %v624 = vadd.f32 0.0, %v623
    %v625 = vpop.f32.mrb[0].mxu0
    %626 = vmatprep.mubr.f32.mxu0 0.0
    %627 = vmatmul.mubr.f32.gmra.mrb[0].mxu0 %v257
    %v628 = vpop.f32.mrb[0].mxu0
    %v629 = vadd.f32 0.0, %v628
    %v630 = vpop.f32.mrb[0].mxu0
    %631 = vmatprep.mubr.f32.mxu0 0.0
    %632 = vmatmul.mubr.f32.gmra.mrb[0].mxu0 %v260
    %v633 = vpop.f32.mrb[0].mxu0
    %v634 = vadd.f32 0.0, %v633
    %v635 = vpop.f32.mrb[0].mxu0
    %636 = vmatprep.mubr.f32.mxu0 0.0
    %637 = vmatmul.mubr.f32.gmra.mrb[0].mxu0 %v263
    %v638 = vpop.f32.mrb[0].mxu0
    %v639 = vadd.f32 0.0, %v638
    %v640 = vpop.f32.mrb[0].mxu0
    %641 = vmatprep.mubr.f32.mxu0 0.0
    %642 = vmatmul.mubr.f32.gmra.mrb[0].mxu0 %v266
    %v643 = vpop.f32.mrb[0].mxu0
    %v644 = vadd.f32 0.0, %v643
    %v645 = vpop.f32.mrb[0].mxu0
    %646 = vmatprep.mubr.f32.mxu0 0.0
    %647 = vmatmul.mubr.f32.gmra.mrb[0].mxu0 %v269
    %v648 = vpop.f32.mrb[0].mxu0
    %v649 = vadd.f32 0.0, %v648
    %v650 = vpop.f32.mrb[0].mxu0
    %651 = vmatprep.mubr.f32.mxu0 0.0
    %652 = vmatmul.mubr.f32.gmra.mrb[0].mxu0 %v272
    %v653 = vpop.f32.mrb[0].mxu0
    %v654 = vadd.f32 0.0, %v653
    %v655 = vpop.f32.mrb[0].mxu0
    %656 = vmatprep.mubr.f32.mxu0 0.0
    %657 = vmatmul.mubr.f32.gmra.mrb[0].mxu0 %v275
    %v658 = vpop.f32.mrb[0].mxu0
    %v659 = vadd.f32 0.0, %v658
    %v660 = vpop.f32.mrb[0].mxu0
    %661 = vmatprep.mubr.f32.mxu0 0.0
    %662 = vmatmul.mubr.f32.gmra.mrb[0].mxu0 %v278
    %v663 = vpop.f32.mrb[0].mxu0
    %v664 = vadd.f32 0.0, %v663
    %v665 = vpop.f32.mrb[0].mxu0
    %666 = vmatprep.mubr.f32.mxu0 0.0
    %667 = vmatmul.mubr.f32.gmra.mrb[0].mxu0 %v281
    %v668 = vpop.f32.mrb[0].mxu0
    %v669 = vadd.f32 0.0, %v668
    %v670 = vpop.f32.mrb[0].mxu0
    %671 = vmatprep.mubr.f32.mxu0 0.0
    %672 = vmatmul.mubr.f32.gmra.mrb[0].mxu0 %v284
    %v673 = vpop.f32.mrb[0].mxu0
    %v674 = vadd.f32 0.0, %v673
    %v675 = vpop.f32.mrb[0].mxu0
    %676 = vmatprep.mubr.f32.mxu0 0.0
    %677 = vmatmul.mubr.f32.gmra.mrb[0].mxu0 %v287
    %v678 = vpop.f32.mrb[0].mxu0
    %v679 = vadd.f32 0.0, %v678
    %v680 = vpop.f32.mrb[0].mxu0
    %681 = vmatprep.mubr.f32.mxu0 0.0
    %682 = vmatmul.mubr.f32.gmra.mrb[0].mxu0 %v290
    %v683 = vpop.f32.mrb[0].mxu0
    %v684 = vadd.f32 0.0, %v683
    %v685 = vpop.f32.mrb[0].mxu0
    %686 = vmatprep.mubr.f32.mxu0 0.0
    %687 = vmatmul.mubr.f32.gmra.mrb[0].mxu0 %v293
    %v688 = vpop.f32.mrb[0].mxu0
    %v689 = vadd.f32 0.0, %v688
    %v690 = vpop.f32.mrb[0].mxu0
    %691 = vmatprep.mubr.f32.mxu0 0.0
    %692 = vmatmul.mubr.f32.gmra.mrb[0].mxu0 %v296
    %v693 = vpop.f32.mrb[0].mxu0
    %v694 = vadd.f32 0.0, %v693
    %v695 = vpop.f32.mrb[0].mxu0
    %696 = vmatprep.mubr.f32.mxu0 0.0
    %697 = vmatmul.mubr.f32.gmra.mrb[0].mxu0 %v299
    %v698 = vpop.f32.mrb[0].mxu0
    %v699 = vadd.f32 0.0, %v698
    %v700 = vpop.f32.mrb[0].mxu0
    %701 = vmatprep.mubr.f32.mxu0 0.0
    %702 = vmatmul.mubr.f32.gmra.mrb[0].mxu0 %v302
    %v703 = vpop.f32.mrb[0].mxu0
    %v704 = vadd.f32 0.0, %v703
    %v705 = vpop.f32.mrb[0].mxu0
    %706 = vmatprep.mubr.f32.mxu0 0.0
    %707 = vmatmul.mubr.f32.gmra.mrb[0].mxu0 %v305
    %v708 = vpop.f32.mrb[0].mxu0
    %v709 = vadd.f32 0.0, %v708
    %v710 = vpop.f32.mrb[0].mxu0
    %711 = vmatprep.mubr.f32.mxu0 0.0
    %712 = vmatmul.mubr.f32.gmra.mrb[0].mxu0 %v308
    %v713 = vpop.f32.mrb[0].mxu0
    %v714 = vadd.f32 0.0, %v713
    %v715 = vpop.f32.mrb[0].mxu0
    %716 = vmatprep.mubr.f32.mxu0 0.0
    %717 = vmatmul.mubr.f32.gmra.mrb[0].mxu0 %v311
    %v718 = vpop.f32.mrb[0].mxu0
    %v719 = vadd.f32 0.0, %v718
    %v720 = vpop.f32.mrb[0].mxu0
    %721 = vmatprep.mubr.f32.mxu0 0.0
    %722 = vmatmul.mubr.f32.gmra.mrb[0].mxu0 %v314
    %v723 = vpop.f32.mrb[0].mxu0
    %v724 = vadd.f32 0.0, %v723
    %v725 = vpop.f32.mrb[0].mxu0
    %726 = vmatprep.mubr.f32.mxu0 0.0
    %727 = vmatmul.mubr.f32.gmra.mrb[0].mxu0 %v317
    %v728 = vpop.f32.mrb[0].mxu0
    %v729 = vadd.f32 0.0, %v728
    %v730 = vpop.f32.mrb[0].mxu0
    %731 = vmatprep.mubr.f32.mxu0 0.0
    %732 = vmatmul.mubr.f32.gmra.mrb[0].mxu0 %v320
    %v733 = vpop.f32.mrb[0].mxu0
    %v734 = vadd.f32 0.0, %v733
    %v735 = vpop.f32.mrb[0].mxu0
    %736 = vmatprep.mubr.f32.mxu0 0.0
    %737 = vmatmul.mubr.f32.gmra.mrb[0].mxu0 %v323
    %v738 = vpop.f32.mrb[0].mxu0
    %v739 = vadd.f32 0.0, %v738
    %v740 = vpop.f32.mrb[0].mxu0
    %741 = vmatprep.mubr.f32.mxu0 0.0
    %742 = vmatmul.mubr.f32.gmra.mrb[0].mxu0 %v326
    %v743 = vpop.f32.mrb[0].mxu0
    %v744 = vadd.f32 0.0, %v743
    %v745 = vpop.f32.mrb[0].mxu0
    %746 = vmatprep.mubr.f32.mxu0 0.0
    %747 = vmatmul.mubr.f32.gmra.mrb[0].mxu0 %v329
    %v748 = vpop.f32.mrb[0].mxu0
    %v749 = vadd.f32 0.0, %v748
    %v750 = vpop.f32.mrb[0].mxu0
    %751 = vmatprep.mubr.f32.mxu0 0.0
    %752 = vmatmul.mubr.f32.gmra.mrb[0].mxu0 %v332
    %v753 = vpop.f32.mrb[0].mxu0
    %v754 = vadd.f32 0.0, %v753
    %v755 = vpop.f32.mrb[0].mxu0
    %756 = vmatprep.mubr.f32.mxu0 0.0
    %757 = vmatmul.mubr.f32.gmra.mrb[0].mxu0 %v335
    %v758 = vpop.f32.mrb[0].mxu0
    %v759 = vadd.f32 0.0, %v758
    %v760 = vpop.f32.mrb[0].mxu0
    %761 = vmatprep.mubr.f32.mxu0 0.0
    %762 = vmatmul.mubr.f32.gmra.mrb[0].mxu0 %v338
    %v763 = vpop.f32.mrb[0].mxu0
    %v764 = vadd.f32 0.0, %v763
    %v765 = vpop.f32.mrb[0].mxu0
    %766 = vmatprep.mubr.f32.mxu0 0.0
    %767 = vmatmul.mubr.f32.gmra.mrb[0].mxu0 %v341
    %v768 = vpop.f32.mrb[0].mxu0
    %v769 = vadd.f32 0.0, %v768
    %v770 = vpop.f32.mrb[0].mxu0
    %771 = vmatprep.mubr.f32.mxu0 0.0
    %772 = vmatmul.mubr.f32.gmra.mrb[0].mxu0 %v344
    %v773 = vpop.f32.mrb[0].mxu0
    %v774 = vadd.f32 0.0, %v773
    %v775 = vpop.f32.mrb[0].mxu0
    %776 = vmatprep.mubr.f32.mxu0 0.0
    %777 = vmatmul.mubr.f32.gmra.mrb[0].mxu0 %v347
    %v778 = vpop.f32.mrb[0].mxu0
    %v779 = vadd.f32 0.0, %v778
    %v780 = vpop.f32.mrb[0].mxu0
    %781 = vmatprep.mubr.f32.mxu0 0.0
    %782 = vmatmul.mubr.f32.gmra.mrb[0].mxu0 %v350
    %v783 = vpop.f32.mrb[0].mxu0
    %v784 = vadd.f32 0.0, %v783
    %v785 = vpop.f32.mrb[0].mxu0
    %786 = vmatprep.mubr.f32.mxu0 0.0
    %787 = vmatmul.mubr.f32.gmra.mrb[0].mxu0 %v353
    %v788 = vpop.f32.mrb[0].mxu0
    %v789 = vadd.f32 0.0, %v788
    %v790 = vpop.f32.mrb[0].mxu0
    %791 = vmatprep.mubr.f32.mxu0 0.0
    %792 = vmatmul.mubr.f32.gmra.mrb[0].mxu0 %v356
    %v793 = vpop.f32.mrb[0].mxu0
    %v794 = vadd.f32 0.0, %v793
    %v795 = vpop.f32.mrb[0].mxu0
    %796 = vmatprep.mubr.f32.mxu0 0.0
    %797 = vmatmul.mubr.f32.gmra.mrb[0].mxu0 %v359
    %v798 = vpop.f32.mrb[0].mxu0
    %v799 = vadd.f32 0.0, %v798
    %v800 = vpop.f32.mrb[0].mxu0
    %801 = vmatprep.mubr.f32.mxu0 0.0
    %802 = vmatmul.mubr.f32.gmra.mrb[0].mxu0 %v362
    %v803 = vpop.f32.mrb[0].mxu0
    %v804 = vadd.f32 0.0, %v803
    %v805 = vpop.f32.mrb[0].mxu0
    %806 = vmatprep.mubr.f32.mxu0 0.0
    %807 = vmatmul.mubr.f32.gmra.mrb[0].mxu0 %v365
    %v808 = vpop.f32.mrb[0].mxu0
    %v809 = vadd.f32 0.0, %v808
    %v810 = vpop.f32.mrb[0].mxu0
    %811 = vmatprep.mubr.f32.mxu0 0.0
    %812 = vmatmul.mubr.f32.gmra.mrb[0].mxu0 %v368
    %v813 = vpop.f32.mrb[0].mxu0
    %v814 = vadd.f32 0.0, %v813
    %v815 = vpop.f32.mrb[0].mxu0
    %816 = vmatprep.mubr.f32.mxu0 0.0
    %817 = vmatmul.mubr.f32.gmra.mrb[0].mxu0 %v371
    %v818 = vpop.f32.mrb[0].mxu0
    %v819 = vadd.f32 0.0, %v818
    %v820 = vpop.f32.mrb[0].mxu0
    %821 = vmatprep.mubr.f32.mxu0 0.0
    %822 = vmatmul.mubr.f32.gmra.mrb[0].mxu0 %v374
    %v823 = vpop.f32.mrb[0].mxu0
    %v824 = vadd.f32 0.0, %v823
    %v825 = vpop.f32.mrb[0].mxu0
    %826 = vmatprep.mubr.f32.mxu0 0.0
    %827 = vmatmul.mubr.f32.gmra.mrb[0].mxu0 %v377
    %v828 = vpop.f32.mrb[0].mxu0
    %v829 = vadd.f32 0.0, %v828
    %v830 = vpop.f32.mrb[0].mxu0
    %831 = vmatprep.mubr.f32.mxu0 0.0
    %832 = vmatmul.mubr.f32.gmra.mrb[0].mxu0 %v380
    %v833 = vpop.f32.mrb[0].mxu0
    %v834 = vadd.f32 0.0, %v833
    %v835 = vpop.f32.mrb[0].mxu0
    %836 = vmatprep.mubr.f32.mxu0 0.0
    %837 = vmatmul.mubr.f32.gmra.mrb[0].mxu0 %v383
    %v838 = vpop.f32.mrb[0].mxu0
    %v839 = vadd.f32 0.0, %v838
    %v840 = vpop.f32.mrb[0].mxu0
    %841 = vmatprep.mubr.f32.mxu0 0.0
    %842 = vmatmul.mubr.f32.gmra.mrb[0].mxu0 %v386
    %v843 = vpop.f32.mrb[0].mxu0
    %v844 = vadd.f32 0.0, %v843
    %v845 = vpop.f32.mrb[0].mxu0
    %846 = vmatprep.mubr.f32.mxu0 0.0
    %847 = vmatmul.mubr.f32.gmra.mrb[0].mxu0 %v389
    %v848 = vpop.f32.mrb[0].mxu0
    %v849 = vadd.f32 0.0, %v848
    %v850 = vpop.f32.mrb[0].mxu0
    %851 = vmatprep.mubr.f32.mxu0 0.0
    %852 = vmatmul.mubr.f32.gmra.mrb[0].mxu0 %v392
    %v853 = vpop.f32.mrb[0].mxu0
    %v854 = vadd.f32 0.0, %v853
    %v855 = vpop.f32.mrb[0].mxu0
    %856 = vmatprep.mubr.f32.mxu0 0.0
    %857 = vmatmul.mubr.f32.gmra.mrb[0].mxu0 %v395
    %v858 = vpop.f32.mrb[0].mxu0
    %v859 = vadd.f32 0.0, %v858
    %v860 = vpop.f32.mrb[0].mxu0
    %861 = vdwg.mxu0
    %862 = vmatprep.subr.mxu0 0.0
    %863 = vmatpush1.msra.mxu0 %v464
    %864 = vmatprep.subr.mxu0 0.0
    %865 = vmatpush1.msra.mxu0 %v469
    %866 = vmatprep.subr.mxu0 0.0
    %867 = vmatpush1.msra.mxu0 %v474
    %868 = vmatprep.subr.mxu0 0.0
    %869 = vmatpush1.msra.mxu0 %v479
    %870 = vmatprep.subr.mxu0 0.0
    %871 = vmatpush1.msra.mxu0 %v484
    %872 = vmatprep.subr.mxu0 0.0
    %873 = vmatpush1.msra.mxu0 %v489
    %874 = vmatprep.subr.mxu0 0.0
    %875 = vmatpush1.msra.mxu0 %v494
    %876 = vmatprep.subr.mxu0 0.0
    %877 = vmatpush1.msra.mxu0 %v499
    %878 = vmatprep.subr.mxu0 0.0
    %879 = vmatpush1.msra.mxu0 %v504
    %880 = vmatprep.subr.mxu0 0.0
    %881 = vmatpush1.msra.mxu0 %v509
    %882 = vmatprep.subr.mxu0 0.0
    %883 = vmatpush1.msra.mxu0 %v514
    %884 = vmatprep.subr.mxu0 0.0
    %885 = vmatpush1.msra.mxu0 %v519
    %886 = vmatprep.subr.mxu0 0.0
    %887 = vmatpush1.msra.mxu0 %v524
    %888 = vmatprep.subr.mxu0 0.0
    %889 = vmatpush1.msra.mxu0 %v529
    %890 = vmatprep.subr.mxu0 0.0
    %891 = vmatpush1.msra.mxu0 %v534
    %892 = vmatprep.subr.mxu0 0.0
    %893 = vmatpush1.msra.mxu0 %v539
    %894 = vmatprep.subr.mxu0 0.0
    %895 = vmatpush1.msra.mxu0 0.0
    %896 = vmatprep.subr.mxu0 0.0
    %897 = vmatpush1.msra.mxu0 0.0
    %898 = vmatprep.subr.mxu0 0.0
    %899 = vmatpush1.msra.mxu0 0.0
    %900 = vmatprep.subr.mxu0 0.0
    %901 = vmatpush1.msra.mxu0 0.0
    %902 = vmatprep.subr.mxu0 0.0
    %903 = vmatpush1.msra.mxu0 0.0
    %904 = vmatprep.subr.mxu0 0.0
    %905 = vmatpush1.msra.mxu0 0.0
    %906 = vmatprep.subr.mxu0 0.0
    %907 = vmatpush1.msra.mxu0 0.0
    %908 = vmatprep.subr.mxu0 0.0
    %909 = vmatpush1.msra.mxu0 0.0
    %910 = vmatprep.subr.mxu0 0.0
    %911 = vmatpush1.msra.mxu0 0.0
    %912 = vmatprep.subr.mxu0 0.0
    %913 = vmatpush1.msra.mxu0 0.0
    %914 = vmatprep.subr.mxu0 0.0
    %915 = vmatpush1.msra.mxu0 0.0
    %916 = vmatprep.subr.mxu0 0.0
    %917 = vmatpush1.msra.mxu0 0.0
    %918 = vmatprep.subr.mxu0 0.0
    %919 = vmatpush1.msra.mxu0 0.0
    %920 = vmatprep.subr.mxu0 0.0
    %921 = vmatpush1.msra.mxu0 0.0
    %922 = vmatprep.subr.mxu0 0.0
    %923 = vmatpush1.msra.mxu0 0.0
    %924 = vmatprep.subr.mxu0 0.0
    %925 = vmatpush1.msra.mxu0 0.0
    %926 = vmatprep.mubr.f32.mxu0 0.0
    %927 = vmatmul.mubr.f32.gmra.mrb[0].mxu0 %v58
    %v928 = vpop.f32.mrb[0].mxu0
    %v929 = vadd.f32 0.0, %v928
    %v930 = vpop.f32.mrb[0].mxu0
    %931 = vmatprep.mubr.f32.mxu0 0.0
    %932 = vmatmul.mubr.f32.gmra.mrb[0].mxu0 %v59
    %v933 = vpop.f32.mrb[0].mxu0
    %v934 = vadd.f32 0.0, %v933
    %v935 = vpop.f32.mrb[0].mxu0
    %936 = vmatprep.mubr.f32.mxu0 0.0
    %937 = vmatmul.mubr.f32.gmra.mrb[0].mxu0 %v60
    %v938 = vpop.f32.mrb[0].mxu0
    %v939 = vadd.f32 0.0, %v938
    %v940 = vpop.f32.mrb[0].mxu0
    %941 = vmatprep.mubr.f32.mxu0 0.0
    %942 = vmatmul.mubr.f32.gmra.mrb[0].mxu0 %v61
    %v943 = vpop.f32.mrb[0].mxu0
    %v944 = vadd.f32 0.0, %v943
    %v945 = vpop.f32.mrb[0].mxu0
    %946 = vmatprep.mubr.f32.mxu0 0.0
    %947 = vmatmul.mubr.f32.gmra.mrb[0].mxu0 %v62
    %v948 = vpop.f32.mrb[0].mxu0
    %v949 = vadd.f32 0.0, %v948
    %v950 = vpop.f32.mrb[0].mxu0
    %951 = vmatprep.mubr.f32.mxu0 0.0
    %952 = vmatmul.mubr.f32.gmra.mrb[0].mxu0 %v63
    %v953 = vpop.f32.mrb[0].mxu0
    %v954 = vadd.f32 0.0, %v953
    %v955 = vpop.f32.mrb[0].mxu0
    %956 = vmatprep.mubr.f32.mxu0 0.0
    %957 = vmatmul.mubr.f32.gmra.mrb[0].mxu0 %v64
    %v958 = vpop.f32.mrb[0].mxu0
    %v959 = vadd.f32 0.0, %v958
    %v960 = vpop.f32.mrb[0].mxu0
    %961 = vmatprep.mubr.f32.mxu0 0.0
    %962 = vmatmul.mubr.f32.gmra.mrb[0].mxu0 %v65
    %v963 = vpop.f32.mrb[0].mxu0
    %v964 = vadd.f32 0.0, %v963
    %v965 = vpop.f32.mrb[0].mxu0
    %966 = vmatprep.mubr.f32.mxu0 0.0
    %967 = vmatmul.mubr.f32.gmra.mrb[0].mxu0 %v66
    %v968 = vpop.f32.mrb[0].mxu0
    %v969 = vadd.f32 0.0, %v968
    %v970 = vpop.f32.mrb[0].mxu0
    %971 = vmatprep.mubr.f32.mxu0 0.0
    %972 = vmatmul.mubr.f32.gmra.mrb[0].mxu0 %v67
    %v973 = vpop.f32.mrb[0].mxu0
    %v974 = vadd.f32 0.0, %v973
    %v975 = vpop.f32.mrb[0].mxu0
    %976 = vmatprep.mubr.f32.mxu0 0.0
    %977 = vmatmul.mubr.f32.gmra.mrb[0].mxu0 %v68
    %v978 = vpop.f32.mrb[0].mxu0
    %v979 = vadd.f32 0.0, %v978
    %v980 = vpop.f32.mrb[0].mxu0
    %981 = vmatprep.mubr.f32.mxu0 0.0
    %982 = vmatmul.mubr.f32.gmra.mrb[0].mxu0 %v69
    %v983 = vpop.f32.mrb[0].mxu0
    %v984 = vadd.f32 0.0, %v983
    %v985 = vpop.f32.mrb[0].mxu0
    %986 = vmatprep.mubr.f32.mxu0 0.0
    %987 = vmatmul.mubr.f32.gmra.mrb[0].mxu0 %v70
    %v988 = vpop.f32.mrb[0].mxu0
    %v989 = vadd.f32 0.0, %v988
    %v990 = vpop.f32.mrb[0].mxu0
    %991 = vmatprep.mubr.f32.mxu0 0.0
    %992 = vmatmul.mubr.f32.gmra.mrb[0].mxu0 %v71
    %v993 = vpop.f32.mrb[0].mxu0
    %v994 = vadd.f32 0.0, %v993
    %v995 = vpop.f32.mrb[0].mxu0
    %996 = vmatprep.mubr.f32.mxu0 0.0
    %997 = vmatmul.mubr.f32.gmra.mrb[0].mxu0 %v72
    %v998 = vpop.f32.mrb[0].mxu0
    %v999 = vadd.f32 0.0, %v998
    %v1000 = vpop.f32.mrb[0].mxu0
    %1001 = vmatprep.mubr.f32.mxu0 0.0
    %1002 = vmatmul.mubr.f32.gmra.mrb[0].mxu0 %v73
    %v1003 = vpop.f32.mrb[0].mxu0
    %v1004 = vadd.f32 0.0, %v1003
    %v1005 = vpop.f32.mrb[0].mxu0
    %1006 = vdwg.mxu0
    %1007 = vmatprep.subr.mxu0 0.0
    %1008 = vmatpush1.msra.mxu0 %v544
    %1009 = vmatprep.subr.mxu0 0.0
    %1010 = vmatpush1.msra.mxu0 %v549
    %1011 = vmatprep.subr.mxu0 0.0
    %1012 = vmatpush1.msra.mxu0 %v554
    %1013 = vmatprep.subr.mxu0 0.0
    %1014 = vmatpush1.msra.mxu0 %v559
    %1015 = vmatprep.subr.mxu0 0.0
    %1016 = vmatpush1.msra.mxu0 %v564
    %1017 = vmatprep.subr.mxu0 0.0
    %1018 = vmatpush1.msra.mxu0 %v569
    %1019 = vmatprep.subr.mxu0 0.0
    %1020 = vmatpush1.msra.mxu0 %v574
    %1021 = vmatprep.subr.mxu0 0.0
    %1022 = vmatpush1.msra.mxu0 %v579
    %1023 = vmatprep.subr.mxu0 0.0
    %1024 = vmatpush1.msra.mxu0 %v584
    %1025 = vmatprep.subr.mxu0 0.0
    %1026 = vmatpush1.msra.mxu0 %v589
    %1027 = vmatprep.subr.mxu0 0.0
    %1028 = vmatpush1.msra.mxu0 %v594
    %1029 = vmatprep.subr.mxu0 0.0
    %1030 = vmatpush1.msra.mxu0 %v599
    %1031 = vmatprep.subr.mxu0 0.0
    %1032 = vmatpush1.msra.mxu0 %v604
    %1033 = vmatprep.subr.mxu0 0.0
    %1034 = vmatpush1.msra.mxu0 %v609
    %1035 = vmatprep.subr.mxu0 0.0
    %1036 = vmatpush1.msra.mxu0 %v614
    %1037 = vmatprep.subr.mxu0 0.0
    %1038 = vmatpush1.msra.mxu0 %v619
    %1039 = vmatprep.subr.mxu0 0.0
    %1040 = vmatpush1.msra.mxu0 0.0
    %1041 = vmatprep.subr.mxu0 0.0
    %1042 = vmatpush1.msra.mxu0 0.0
    %1043 = vmatprep.subr.mxu0 0.0
    %1044 = vmatpush1.msra.mxu0 0.0
    %1045 = vmatprep.subr.mxu0 0.0
    %1046 = vmatpush1.msra.mxu0 0.0
    %1047 = vmatprep.subr.mxu0 0.0
    %1048 = vmatpush1.msra.mxu0 0.0
    %1049 = vmatprep.subr.mxu0 0.0
    %1050 = vmatpush1.msra.mxu0 0.0
    %1051 = vmatprep.subr.mxu0 0.0
    %1052 = vmatpush1.msra.mxu0 0.0
    %1053 = vmatprep.subr.mxu0 0.0
    %1054 = vmatpush1.msra.mxu0 0.0
    %1055 = vmatprep.subr.mxu0 0.0
    %1056 = vmatpush1.msra.mxu0 0.0
    %1057 = vmatprep.subr.mxu0 0.0
    %1058 = vmatpush1.msra.mxu0 0.0
    %1059 = vmatprep.subr.mxu0 0.0
    %1060 = vmatpush1.msra.mxu0 0.0
    %1061 = vmatprep.subr.mxu0 0.0
    %1062 = vmatpush1.msra.mxu0 0.0
    %1063 = vmatprep.subr.mxu0 0.0
    %1064 = vmatpush1.msra.mxu0 0.0
    %1065 = vmatprep.subr.mxu0 0.0
    %1066 = vmatpush1.msra.mxu0 0.0
    %1067 = vmatprep.subr.mxu0 0.0
    %1068 = vmatpush1.msra.mxu0 0.0
    %1069 = vmatprep.subr.mxu0 0.0
    %1070 = vmatpush1.msra.mxu0 0.0
    %1071 = vmatprep.mubr.f32.mxu0 0.0
    %1072 = vmatmul.mubr.f32.gmra.mrb[0].mxu0 %v58
    %v1073 = vpop.f32.mrb[0].mxu0
    %v1074 = vadd.f32 0.0, %v1073
    %v1075 = vpop.f32.mrb[0].mxu0
    %1076 = vmatprep.mubr.f32.mxu0 0.0
    %1077 = vmatmul.mubr.f32.gmra.mrb[0].mxu0 %v59
    %v1078 = vpop.f32.mrb[0].mxu0
    %v1079 = vadd.f32 0.0, %v1078
    %v1080 = vpop.f32.mrb[0].mxu0
    %1081 = vmatprep.mubr.f32.mxu0 0.0
    %1082 = vmatmul.mubr.f32.gmra.mrb[0].mxu0 %v60
    %v1083 = vpop.f32.mrb[0].mxu0
    %v1084 = vadd.f32 0.0, %v1083
    %v1085 = vpop.f32.mrb[0].mxu0
    %1086 = vmatprep.mubr.f32.mxu0 0.0
    %1087 = vmatmul.mubr.f32.gmra.mrb[0].mxu0 %v61
    %v1088 = vpop.f32.mrb[0].mxu0
    %v1089 = vadd.f32 0.0, %v1088
    %v1090 = vpop.f32.mrb[0].mxu0
    %1091 = vmatprep.mubr.f32.mxu0 0.0
    %1092 = vmatmul.mubr.f32.gmra.mrb[0].mxu0 %v62
    %v1093 = vpop.f32.mrb[0].mxu0
    %v1094 = vadd.f32 0.0, %v1093
    %v1095 = vpop.f32.mrb[0].mxu0
    %1096 = vmatprep.mubr.f32.mxu0 0.0
    %1097 = vmatmul.mubr.f32.gmra.mrb[0].mxu0 %v63
    %v1098 = vpop.f32.mrb[0].mxu0
    %v1099 = vadd.f32 0.0, %v1098
    %v1100 = vpop.f32.mrb[0].mxu0
    %1101 = vmatprep.mubr.f32.mxu0 0.0
    %1102 = vmatmul.mubr.f32.gmra.mrb[0].mxu0 %v64
    %v1103 = vpop.f32.mrb[0].mxu0
    %v1104 = vadd.f32 0.0, %v1103
    %v1105 = vpop.f32.mrb[0].mxu0
    %1106 = vmatprep.mubr.f32.mxu0 0.0
    %1107 = vmatmul.mubr.f32.gmra.mrb[0].mxu0 %v65
    %v1108 = vpop.f32.mrb[0].mxu0
    %v1109 = vadd.f32 0.0, %v1108
    %v1110 = vpop.f32.mrb[0].mxu0
    %1111 = vmatprep.mubr.f32.mxu0 0.0
    %1112 = vmatmul.mubr.f32.gmra.mrb[0].mxu0 %v66
    %v1113 = vpop.f32.mrb[0].mxu0
    %v1114 = vadd.f32 0.0, %v1113
    %v1115 = vpop.f32.mrb[0].mxu0
    %1116 = vmatprep.mubr.f32.mxu0 0.0
    %1117 = vmatmul.mubr.f32.gmra.mrb[0].mxu0 %v67
    %v1118 = vpop.f32.mrb[0].mxu0
    %v1119 = vadd.f32 0.0, %v1118
    %v1120 = vpop.f32.mrb[0].mxu0
    %1121 = vmatprep.mubr.f32.mxu0 0.0
    %1122 = vmatmul.mubr.f32.gmra.mrb[0].mxu0 %v68
    %v1123 = vpop.f32.mrb[0].mxu0
    %v1124 = vadd.f32 0.0, %v1123
    %v1125 = vpop.f32.mrb[0].mxu0
    %1126 = vmatprep.mubr.f32.mxu0 0.0
    %1127 = vmatmul.mubr.f32.gmra.mrb[0].mxu0 %v69
    %v1128 = vpop.f32.mrb[0].mxu0
    %v1129 = vadd.f32 0.0, %v1128
    %v1130 = vpop.f32.mrb[0].mxu0
    %1131 = vmatprep.mubr.f32.mxu0 0.0
    %1132 = vmatmul.mubr.f32.gmra.mrb[0].mxu0 %v70
    %v1133 = vpop.f32.mrb[0].mxu0
    %v1134 = vadd.f32 0.0, %v1133
    %v1135 = vpop.f32.mrb[0].mxu0
    %1136 = vmatprep.mubr.f32.mxu0 0.0
    %1137 = vmatmul.mubr.f32.gmra.mrb[0].mxu0 %v71
    %v1138 = vpop.f32.mrb[0].mxu0
    %v1139 = vadd.f32 0.0, %v1138
    %v1140 = vpop.f32.mrb[0].mxu0
    %1141 = vmatprep.mubr.f32.mxu0 0.0
    %1142 = vmatmul.mubr.f32.gmra.mrb[0].mxu0 %v72
    %v1143 = vpop.f32.mrb[0].mxu0
    %v1144 = vadd.f32 0.0, %v1143
    %v1145 = vpop.f32.mrb[0].mxu0
    %1146 = vmatprep.mubr.f32.mxu0 0.0
    %1147 = vmatmul.mubr.f32.gmra.mrb[0].mxu0 %v73
    %v1148 = vpop.f32.mrb[0].mxu0
    %v1149 = vadd.f32 0.0, %v1148
    %v1150 = vpop.f32.mrb[0].mxu0
    %1151 = vdwg.mxu0
    %1152 = vmatprep.subr.mxu0 0.0
    %1153 = vmatpush1.msra.mxu0 %v624
    %1154 = vmatprep.subr.mxu0 0.0
    %1155 = vmatpush1.msra.mxu0 %v629
    %1156 = vmatprep.subr.mxu0 0.0
    %1157 = vmatpush1.msra.mxu0 %v634
    %1158 = vmatprep.subr.mxu0 0.0
    %1159 = vmatpush1.msra.mxu0 %v639
    %1160 = vmatprep.subr.mxu0 0.0
    %1161 = vmatpush1.msra.mxu0 %v644
    %1162 = vmatprep.subr.mxu0 0.0
    %1163 = vmatpush1.msra.mxu0 %v649
    %1164 = vmatprep.subr.mxu0 0.0
    %1165 = vmatpush1.msra.mxu0 %v654
    %1166 = vmatprep.subr.mxu0 0.0
    %1167 = vmatpush1.msra.mxu0 %v659
    %1168 = vmatprep.subr.mxu0 0.0
    %1169 = vmatpush1.msra.mxu0 %v664
    %1170 = vmatprep.subr.mxu0 0.0
    %1171 = vmatpush1.msra.mxu0 %v669
    %1172 = vmatprep.subr.mxu0 0.0
    %1173 = vmatpush1.msra.mxu0 %v674
    %1174 = vmatprep.subr.mxu0 0.0
    %1175 = vmatpush1.msra.mxu0 %v679
    %1176 = vmatprep.subr.mxu0 0.0
    %1177 = vmatpush1.msra.mxu0 %v684
    %1178 = vmatprep.subr.mxu0 0.0
    %1179 = vmatpush1.msra.mxu0 %v689
    %1180 = vmatprep.subr.mxu0 0.0
    %1181 = vmatpush1.msra.mxu0 %v694
    %1182 = vmatprep.subr.mxu0 0.0
    %1183 = vmatpush1.msra.mxu0 %v699
    %1184 = vmatprep.subr.mxu0 0.0
    %1185 = vmatpush1.msra.mxu0 0.0
    %1186 = vmatprep.subr.mxu0 0.0
    %1187 = vmatpush1.msra.mxu0 0.0
    %1188 = vmatprep.subr.mxu0 0.0
    %1189 = vmatpush1.msra.mxu0 0.0
    %1190 = vmatprep.subr.mxu0 0.0
    %1191 = vmatpush1.msra.mxu0 0.0
    %1192 = vmatprep.subr.mxu0 0.0
    %1193 = vmatpush1.msra.mxu0 0.0
    %1194 = vmatprep.subr.mxu0 0.0
    %1195 = vmatpush1.msra.mxu0 0.0
    %1196 = vmatprep.subr.mxu0 0.0
    %1197 = vmatpush1.msra.mxu0 0.0
    %1198 = vmatprep.subr.mxu0 0.0
    %1199 = vmatpush1.msra.mxu0 0.0
    %1200 = vmatprep.subr.mxu0 0.0
    %1201 = vmatpush1.msra.mxu0 0.0
    %1202 = vmatprep.subr.mxu0 0.0
    %1203 = vmatpush1.msra.mxu0 0.0
    %1204 = vmatprep.subr.mxu0 0.0
    %1205 = vmatpush1.msra.mxu0 0.0
    %1206 = vmatprep.subr.mxu0 0.0
    %1207 = vmatpush1.msra.mxu0 0.0
    %1208 = vmatprep.subr.mxu0 0.0
    %1209 = vmatpush1.msra.mxu0 0.0
    %1210 = vmatprep.subr.mxu0 0.0
    %1211 = vmatpush1.msra.mxu0 0.0
    %1212 = vmatprep.subr.mxu0 0.0
    %1213 = vmatpush1.msra.mxu0 0.0
    %1214 = vmatprep.subr.mxu0 0.0
    %1215 = vmatpush1.msra.mxu0 0.0
    %1216 = vmatprep.mubr.f32.mxu0 0.0
    %1217 = vmatmul.mubr.f32.gmra.mrb[0].mxu0 %v58
    %v1218 = vpop.f32.mrb[0].mxu0
    %v1219 = vadd.f32 0.0, %v1218
    %v1220 = vpop.f32.mrb[0].mxu0
    %1221 = vmatprep.mubr.f32.mxu0 0.0
    %1222 = vmatmul.mubr.f32.gmra.mrb[0].mxu0 %v59
    %v1223 = vpop.f32.mrb[0].mxu0
    %v1224 = vadd.f32 0.0, %v1223
    %v1225 = vpop.f32.mrb[0].mxu0
    %1226 = vmatprep.mubr.f32.mxu0 0.0
    %1227 = vmatmul.mubr.f32.gmra.mrb[0].mxu0 %v60
    %v1228 = vpop.f32.mrb[0].mxu0
    %v1229 = vadd.f32 0.0, %v1228
    %v1230 = vpop.f32.mrb[0].mxu0
    %1231 = vmatprep.mubr.f32.mxu0 0.0
    %1232 = vmatmul.mubr.f32.gmra.mrb[0].mxu0 %v61
    %v1233 = vpop.f32.mrb[0].mxu0
    %v1234 = vadd.f32 0.0, %v1233
    %v1235 = vpop.f32.mrb[0].mxu0
    %1236 = vmatprep.mubr.f32.mxu0 0.0
    %1237 = vmatmul.mubr.f32.gmra.mrb[0].mxu0 %v62
    %v1238 = vpop.f32.mrb[0].mxu0
    %v1239 = vadd.f32 0.0, %v1238
    %v1240 = vpop.f32.mrb[0].mxu0
    %1241 = vmatprep.mubr.f32.mxu0 0.0
    %1242 = vmatmul.mubr.f32.gmra.mrb[0].mxu0 %v63
    %v1243 = vpop.f32.mrb[0].mxu0
    %v1244 = vadd.f32 0.0, %v1243
    %v1245 = vpop.f32.mrb[0].mxu0
    %1246 = vmatprep.mubr.f32.mxu0 0.0
    %1247 = vmatmul.mubr.f32.gmra.mrb[0].mxu0 %v64
    %v1248 = vpop.f32.mrb[0].mxu0
    %v1249 = vadd.f32 0.0, %v1248
    %v1250 = vpop.f32.mrb[0].mxu0
    %1251 = vmatprep.mubr.f32.mxu0 0.0
    %1252 = vmatmul.mubr.f32.gmra.mrb[0].mxu0 %v65
    %v1253 = vpop.f32.mrb[0].mxu0
    %v1254 = vadd.f32 0.0, %v1253
    %v1255 = vpop.f32.mrb[0].mxu0
    %1256 = vmatprep.mubr.f32.mxu0 0.0
    %1257 = vmatmul.mubr.f32.gmra.mrb[0].mxu0 %v66
    %v1258 = vpop.f32.mrb[0].mxu0
    %v1259 = vadd.f32 0.0, %v1258
    %v1260 = vpop.f32.mrb[0].mxu0
    %1261 = vmatprep.mubr.f32.mxu0 0.0
    %1262 = vmatmul.mubr.f32.gmra.mrb[0].mxu0 %v67
    %v1263 = vpop.f32.mrb[0].mxu0
    %v1264 = vadd.f32 0.0, %v1263
    %v1265 = vpop.f32.mrb[0].mxu0
    %1266 = vmatprep.mubr.f32.mxu0 0.0
    %1267 = vmatmul.mubr.f32.gmra.mrb[0].mxu0 %v68
    %v1268 = vpop.f32.mrb[0].mxu0
    %v1269 = vadd.f32 0.0, %v1268
    %v1270 = vpop.f32.mrb[0].mxu0
    %1271 = vmatprep.mubr.f32.mxu0 0.0
    %1272 = vmatmul.mubr.f32.gmra.mrb[0].mxu0 %v69
    %v1273 = vpop.f32.mrb[0].mxu0
    %v1274 = vadd.f32 0.0, %v1273
    %v1275 = vpop.f32.mrb[0].mxu0
    %1276 = vmatprep.mubr.f32.mxu0 0.0
    %1277 = vmatmul.mubr.f32.gmra.mrb[0].mxu0 %v70
    %v1278 = vpop.f32.mrb[0].mxu0
    %v1279 = vadd.f32 0.0, %v1278
    %v1280 = vpop.f32.mrb[0].mxu0
    %1281 = vmatprep.mubr.f32.mxu0 0.0
    %1282 = vmatmul.mubr.f32.gmra.mrb[0].mxu0 %v71
    %v1283 = vpop.f32.mrb[0].mxu0
    %v1284 = vadd.f32 0.0, %v1283
    %v1285 = vpop.f32.mrb[0].mxu0
    %1286 = vmatprep.mubr.f32.mxu0 0.0
    %1287 = vmatmul.mubr.f32.gmra.mrb[0].mxu0 %v72
    %v1288 = vpop.f32.mrb[0].mxu0
    %v1289 = vadd.f32 0.0, %v1288
    %v1290 = vpop.f32.mrb[0].mxu0
    %1291 = vmatprep.mubr.f32.mxu0 0.0
    %1292 = vmatmul.mubr.f32.gmra.mrb[0].mxu0 %v73
    %v1293 = vpop.f32.mrb[0].mxu0
    %v1294 = vadd.f32 0.0, %v1293
    %v1295 = vpop.f32.mrb[0].mxu0
    %1296 = vdwg.mxu0
    %1297 = vmatprep.subr.mxu0 0.0
    %1298 = vmatpush1.msra.mxu0 %v704
    %1299 = vmatprep.subr.mxu0 0.0
    %1300 = vmatpush1.msra.mxu0 %v709
    %1301 = vmatprep.subr.mxu0 0.0
    %1302 = vmatpush1.msra.mxu0 %v714
    %1303 = vmatprep.subr.mxu0 0.0
    %1304 = vmatpush1.msra.mxu0 %v719
    %1305 = vmatprep.subr.mxu0 0.0
    %1306 = vmatpush1.msra.mxu0 %v724
    %1307 = vmatprep.subr.mxu0 0.0
    %1308 = vmatpush1.msra.mxu0 %v729
    %1309 = vmatprep.subr.mxu0 0.0
    %1310 = vmatpush1.msra.mxu0 %v734
    %1311 = vmatprep.subr.mxu0 0.0
    %1312 = vmatpush1.msra.mxu0 %v739
    %1313 = vmatprep.subr.mxu0 0.0
    %1314 = vmatpush1.msra.mxu0 %v744
    %1315 = vmatprep.subr.mxu0 0.0
    %1316 = vmatpush1.msra.mxu0 %v749
    %1317 = vmatprep.subr.mxu0 0.0
    %1318 = vmatpush1.msra.mxu0 %v754
    %1319 = vmatprep.subr.mxu0 0.0
    %1320 = vmatpush1.msra.mxu0 %v759
    %1321 = vmatprep.subr.mxu0 0.0
    %1322 = vmatpush1.msra.mxu0 %v764
    %1323 = vmatprep.subr.mxu0 0.0
    %1324 = vmatpush1.msra.mxu0 %v769
    %1325 = vmatprep.subr.mxu0 0.0
    %1326 = vmatpush1.msra.mxu0 %v774
    %1327 = vmatprep.subr.mxu0 0.0
    %1328 = vmatpush1.msra.mxu0 %v779
    %1329 = vmatprep.subr.mxu0 0.0
    %1330 = vmatpush1.msra.mxu0 0.0
    %1331 = vmatprep.subr.mxu0 0.0
    %1332 = vmatpush1.msra.mxu0 0.0
    %1333 = vmatprep.subr.mxu0 0.0
    %1334 = vmatpush1.msra.mxu0 0.0
    %1335 = vmatprep.subr.mxu0 0.0
    %1336 = vmatpush1.msra.mxu0 0.0
    %1337 = vmatprep.subr.mxu0 0.0
    %1338 = vmatpush1.msra.mxu0 0.0
    %1339 = vmatprep.subr.mxu0 0.0
    %1340 = vmatpush1.msra.mxu0 0.0
    %1341 = vmatprep.subr.mxu0 0.0
    %1342 = vmatpush1.msra.mxu0 0.0
    %1343 = vmatprep.subr.mxu0 0.0
    %1344 = vmatpush1.msra.mxu0 0.0
    %1345 = vmatprep.subr.mxu0 0.0
    %1346 = vmatpush1.msra.mxu0 0.0
    %1347 = vmatprep.subr.mxu0 0.0
    %1348 = vmatpush1.msra.mxu0 0.0
    %1349 = vmatprep.subr.mxu0 0.0
    %1350 = vmatpush1.msra.mxu0 0.0
    %1351 = vmatprep.subr.mxu0 0.0
    %1352 = vmatpush1.msra.mxu0 0.0
    %1353 = vmatprep.subr.mxu0 0.0
    %1354 = vmatpush1.msra.mxu0 0.0
    %1355 = vmatprep.subr.mxu0 0.0
    %1356 = vmatpush1.msra.mxu0 0.0
    %1357 = vmatprep.subr.mxu0 0.0
    %1358 = vmatpush1.msra.mxu0 0.0
    %1359 = vmatprep.subr.mxu0 0.0
    %1360 = vmatpush1.msra.mxu0 0.0
    %1361 = vmatprep.mubr.f32.mxu0 0.0
    %1362 = vmatmul.mubr.f32.gmra.mrb[0].mxu0 %v58
    %v1363 = vpop.f32.mrb[0].mxu0
    %v1364 = vadd.f32 0.0, %v1363
    %v1365 = vpop.f32.mrb[0].mxu0
    %1366 = vmatprep.mubr.f32.mxu0 0.0
    %1367 = vmatmul.mubr.f32.gmra.mrb[0].mxu0 %v59
    %v1368 = vpop.f32.mrb[0].mxu0
    %v1369 = vadd.f32 0.0, %v1368
    %v1370 = vpop.f32.mrb[0].mxu0
    %1371 = vmatprep.mubr.f32.mxu0 0.0
    %1372 = vmatmul.mubr.f32.gmra.mrb[0].mxu0 %v60
    %v1373 = vpop.f32.mrb[0].mxu0
    %v1374 = vadd.f32 0.0, %v1373
    %v1375 = vpop.f32.mrb[0].mxu0
    %1376 = vmatprep.mubr.f32.mxu0 0.0
    %1377 = vmatmul.mubr.f32.gmra.mrb[0].mxu0 %v61
    %v1378 = vpop.f32.mrb[0].mxu0
    %v1379 = vadd.f32 0.0, %v1378
    %v1380 = vpop.f32.mrb[0].mxu0
    %1381 = vmatprep.mubr.f32.mxu0 0.0
    %1382 = vmatmul.mubr.f32.gmra.mrb[0].mxu0 %v62
    %v1383 = vpop.f32.mrb[0].mxu0
    %v1384 = vadd.f32 0.0, %v1383
    %v1385 = vpop.f32.mrb[0].mxu0
    %1386 = vmatprep.mubr.f32.mxu0 0.0
    %1387 = vmatmul.mubr.f32.gmra.mrb[0].mxu0 %v63
    %v1388 = vpop.f32.mrb[0].mxu0
    %v1389 = vadd.f32 0.0, %v1388
    %v1390 = vpop.f32.mrb[0].mxu0
    %1391 = vmatprep.mubr.f32.mxu0 0.0
    %1392 = vmatmul.mubr.f32.gmra.mrb[0].mxu0 %v64
    %v1393 = vpop.f32.mrb[0].mxu0
    %v1394 = vadd.f32 0.0, %v1393
    %v1395 = vpop.f32.mrb[0].mxu0
    %1396 = vmatprep.mubr.f32.mxu0 0.0
    %1397 = vmatmul.mubr.f32.gmra.mrb[0].mxu0 %v65
    %v1398 = vpop.f32.mrb[0].mxu0
    %v1399 = vadd.f32 0.0, %v1398
    %v1400 = vpop.f32.mrb[0].mxu0
    %1401 = vmatprep.mubr.f32.mxu0 0.0
    %1402 = vmatmul.mubr.f32.gmra.mrb[0].mxu0 %v66
    %v1403 = vpop.f32.mrb[0].mxu0
    %v1404 = vadd.f32 0.0, %v1403
    %v1405 = vpop.f32.mrb[0].mxu0
    %1406 = vmatprep.mubr.f32.mxu0 0.0
    %1407 = vmatmul.mubr.f32.gmra.mrb[0].mxu0 %v67
    %v1408 = vpop.f32.mrb[0].mxu0
    %v1409 = vadd.f32 0.0, %v1408
    %v1410 = vpop.f32.mrb[0].mxu0
    %1411 = vmatprep.mubr.f32.mxu0 0.0
    %1412 = vmatmul.mubr.f32.gmra.mrb[0].mxu0 %v68
    %v1413 = vpop.f32.mrb[0].mxu0
    %v1414 = vadd.f32 0.0, %v1413
    %v1415 = vpop.f32.mrb[0].mxu0
    %1416 = vmatprep.mubr.f32.mxu0 0.0
    %1417 = vmatmul.mubr.f32.gmra.mrb[0].mxu0 %v69
    %v1418 = vpop.f32.mrb[0].mxu0
    %v1419 = vadd.f32 0.0, %v1418
    %v1420 = vpop.f32.mrb[0].mxu0
    %1421 = vmatprep.mubr.f32.mxu0 0.0
    %1422 = vmatmul.mubr.f32.gmra.mrb[0].mxu0 %v70
    %v1423 = vpop.f32.mrb[0].mxu0
    %v1424 = vadd.f32 0.0, %v1423
    %v1425 = vpop.f32.mrb[0].mxu0
    %1426 = vmatprep.mubr.f32.mxu0 0.0
    %1427 = vmatmul.mubr.f32.gmra.mrb[0].mxu0 %v71
    %v1428 = vpop.f32.mrb[0].mxu0
    %v1429 = vadd.f32 0.0, %v1428
    %v1430 = vpop.f32.mrb[0].mxu0
    %1431 = vmatprep.mubr.f32.mxu0 0.0
    %1432 = vmatmul.mubr.f32.gmra.mrb[0].mxu0 %v72
    %v1433 = vpop.f32.mrb[0].mxu0
    %v1434 = vadd.f32 0.0, %v1433
    %v1435 = vpop.f32.mrb[0].mxu0
    %1436 = vmatprep.mubr.f32.mxu0 0.0
    %1437 = vmatmul.mubr.f32.gmra.mrb[0].mxu0 %v73
    %v1438 = vpop.f32.mrb[0].mxu0
    %v1439 = vadd.f32 0.0, %v1438
    %v1440 = vpop.f32.mrb[0].mxu0
    %1441 = vdwg.mxu0
    %1442 = vmatprep.subr.mxu0 0.0
    %1443 = vmatpush1.msra.mxu0 %v784
    %1444 = vmatprep.subr.mxu0 0.0
    %1445 = vmatpush1.msra.mxu0 %v789
    %1446 = vmatprep.subr.mxu0 0.0
    %1447 = vmatpush1.msra.mxu0 %v794
    %1448 = vmatprep.subr.mxu0 0.0
    %1449 = vmatpush1.msra.mxu0 %v799
    %1450 = vmatprep.subr.mxu0 0.0
    %1451 = vmatpush1.msra.mxu0 %v804
    %1452 = vmatprep.subr.mxu0 0.0
    %1453 = vmatpush1.msra.mxu0 %v809
    %1454 = vmatprep.subr.mxu0 0.0
    %1455 = vmatpush1.msra.mxu0 %v814
    %1456 = vmatprep.subr.mxu0 0.0
    %1457 = vmatpush1.msra.mxu0 %v819
    %1458 = vmatprep.subr.mxu0 0.0
    %1459 = vmatpush1.msra.mxu0 %v824
    %1460 = vmatprep.subr.mxu0 0.0
    %1461 = vmatpush1.msra.mxu0 %v829
    %1462 = vmatprep.subr.mxu0 0.0
    %1463 = vmatpush1.msra.mxu0 %v834
    %1464 = vmatprep.subr.mxu0 0.0
    %1465 = vmatpush1.msra.mxu0 %v839
    %1466 = vmatprep.subr.mxu0 0.0
    %1467 = vmatpush1.msra.mxu0 %v844
    %1468 = vmatprep.subr.mxu0 0.0
    %1469 = vmatpush1.msra.mxu0 %v849
    %1470 = vmatprep.subr.mxu0 0.0
    %1471 = vmatpush1.msra.mxu0 %v854
    %1472 = vmatprep.subr.mxu0 0.0
    %1473 = vmatpush1.msra.mxu0 %v859
    %1474 = vmatprep.subr.mxu0 0.0
    %1475 = vmatpush1.msra.mxu0 0.0
    %1476 = vmatprep.subr.mxu0 0.0
    %1477 = vmatpush1.msra.mxu0 0.0
    %1478 = vmatprep.subr.mxu0 0.0
    %1479 = vmatpush1.msra.mxu0 0.0
    %1480 = vmatprep.subr.mxu0 0.0
    %1481 = vmatpush1.msra.mxu0 0.0
    %1482 = vmatprep.subr.mxu0 0.0
    %1483 = vmatpush1.msra.mxu0 0.0
    %1484 = vmatprep.subr.mxu0 0.0
    %1485 = vmatpush1.msra.mxu0 0.0
    %1486 = vmatprep.subr.mxu0 0.0
    %1487 = vmatpush1.msra.mxu0 0.0
    %1488 = vmatprep.subr.mxu0 0.0
    %1489 = vmatpush1.msra.mxu0 0.0
    %1490 = vmatprep.subr.mxu0 0.0
    %1491 = vmatpush1.msra.mxu0 0.0
    %1492 = vmatprep.subr.mxu0 0.0
    %1493 = vmatpush1.msra.mxu0 0.0
    %1494 = vmatprep.subr.mxu0 0.0
    %1495 = vmatpush1.msra.mxu0 0.0
    %1496 = vmatprep.subr.mxu0 0.0
    %1497 = vmatpush1.msra.mxu0 0.0
    %1498 = vmatprep.subr.mxu0 0.0
    %1499 = vmatpush1.msra.mxu0 0.0
    %1500 = vmatprep.subr.mxu0 0.0
    %1501 = vmatpush1.msra.mxu0 0.0
    %1502 = vmatprep.subr.mxu0 0.0
    %1503 = vmatpush1.msra.mxu0 0.0
    %1504 = vmatprep.subr.mxu0 0.0
    %1505 = vmatpush1.msra.mxu0 0.0
    %1506 = vmatprep.mubr.f32.mxu0 0.0
    %1507 = vmatmul.mubr.f32.gmra.mrb[0].mxu0 %v58
    %v1508 = vpop.f32.mrb[0].mxu0
    %v1509 = vadd.f32 0.0, %v1508
    %v1510 = vpop.f32.mrb[0].mxu0
    %1511 = vmatprep.mubr.f32.mxu0 0.0
    %1512 = vmatmul.mubr.f32.gmra.mrb[0].mxu0 %v59
    %v1513 = vpop.f32.mrb[0].mxu0
    %v1514 = vadd.f32 0.0, %v1513
    %v1515 = vpop.f32.mrb[0].mxu0
    %1516 = vmatprep.mubr.f32.mxu0 0.0
    %1517 = vmatmul.mubr.f32.gmra.mrb[0].mxu0 %v60
    %v1518 = vpop.f32.mrb[0].mxu0
    %v1519 = vadd.f32 0.0, %v1518
    %v1520 = vpop.f32.mrb[0].mxu0
    %1521 = vmatprep.mubr.f32.mxu0 0.0
    %1522 = vmatmul.mubr.f32.gmra.mrb[0].mxu0 %v61
    %v1523 = vpop.f32.mrb[0].mxu0
    %v1524 = vadd.f32 0.0, %v1523
    %v1525 = vpop.f32.mrb[0].mxu0
    %1526 = vmatprep.mubr.f32.mxu0 0.0
    %1527 = vmatmul.mubr.f32.gmra.mrb[0].mxu0 %v62
    %v1528 = vpop.f32.mrb[0].mxu0
    %v1529 = vadd.f32 0.0, %v1528
    %v1530 = vpop.f32.mrb[0].mxu0
    %1531 = vmatprep.mubr.f32.mxu0 0.0
    %1532 = vmatmul.mubr.f32.gmra.mrb[0].mxu0 %v63
    %v1533 = vpop.f32.mrb[0].mxu0
    %v1534 = vadd.f32 0.0, %v1533
    %v1535 = vpop.f32.mrb[0].mxu0
    %1536 = vmatprep.mubr.f32.mxu0 0.0
    %1537 = vmatmul.mubr.f32.gmra.mrb[0].mxu0 %v64
    %v1538 = vpop.f32.mrb[0].mxu0
    %v1539 = vadd.f32 0.0, %v1538
    %v1540 = vpop.f32.mrb[0].mxu0
    %1541 = vmatprep.mubr.f32.mxu0 0.0
    %1542 = vmatmul.mubr.f32.gmra.mrb[0].mxu0 %v65
    %v1543 = vpop.f32.mrb[0].mxu0
    %v1544 = vadd.f32 0.0, %v1543
    %v1545 = vpop.f32.mrb[0].mxu0
    %1546 = vmatprep.mubr.f32.mxu0 0.0
    %1547 = vmatmul.mubr.f32.gmra.mrb[0].mxu0 %v66
    %v1548 = vpop.f32.mrb[0].mxu0
    %v1549 = vadd.f32 0.0, %v1548
    %v1550 = vpop.f32.mrb[0].mxu0
    %1551 = vmatprep.mubr.f32.mxu0 0.0
    %1552 = vmatmul.mubr.f32.gmra.mrb[0].mxu0 %v67
    %v1553 = vpop.f32.mrb[0].mxu0
    %v1554 = vadd.f32 0.0, %v1553
    %v1555 = vpop.f32.mrb[0].mxu0
    %1556 = vmatprep.mubr.f32.mxu0 0.0
    %1557 = vmatmul.mubr.f32.gmra.mrb[0].mxu0 %v68
    %v1558 = vpop.f32.mrb[0].mxu0
    %v1559 = vadd.f32 0.0, %v1558
    %v1560 = vpop.f32.mrb[0].mxu0
    %1561 = vmatprep.mubr.f32.mxu0 0.0
    %1562 = vmatmul.mubr.f32.gmra.mrb[0].mxu0 %v69
    %v1563 = vpop.f32.mrb[0].mxu0
    %v1564 = vadd.f32 0.0, %v1563
    %v1565 = vpop.f32.mrb[0].mxu0
    %1566 = vmatprep.mubr.f32.mxu0 0.0
    %1567 = vmatmul.mubr.f32.gmra.mrb[0].mxu0 %v70
    %v1568 = vpop.f32.mrb[0].mxu0
    %v1569 = vadd.f32 0.0, %v1568
    %v1570 = vpop.f32.mrb[0].mxu0
    %1571 = vmatprep.mubr.f32.mxu0 0.0
    %1572 = vmatmul.mubr.f32.gmra.mrb[0].mxu0 %v71
    %v1573 = vpop.f32.mrb[0].mxu0
    %v1574 = vadd.f32 0.0, %v1573
    %v1575 = vpop.f32.mrb[0].mxu0
    %1576 = vmatprep.mubr.f32.mxu0 0.0
    %1577 = vmatmul.mubr.f32.gmra.mrb[0].mxu0 %v72
    %v1578 = vpop.f32.mrb[0].mxu0
    %v1579 = vadd.f32 0.0, %v1578
    %v1580 = vpop.f32.mrb[0].mxu0
    %1581 = vmatprep.mubr.f32.mxu0 0.0
    %1582 = vmatmul.mubr.f32.gmra.mrb[0].mxu0 %v73
    %v1583 = vpop.f32.mrb[0].mxu0
    %v1584 = vadd.f32 0.0, %v1583
    %v1585 = vpop.f32.mrb[0].mxu0
    %1586 = vdwg.mxu0
    %v1587 = vmul.f32 %v929, %v929
    %v1588 = vmul.f32 %v934, %v934
    %v1589 = vmul.f32 %v939, %v939
    %v1590 = vmul.f32 %v944, %v944
    %v1591 = vmul.f32 %v949, %v949
    %v1592 = vmul.f32 %v954, %v954
    %v1593 = vmul.f32 %v959, %v959
    %v1594 = vmul.f32 %v964, %v964
    %v1595 = vmul.f32 %v969, %v969
    %v1596 = vmul.f32 %v974, %v974
    %v1597 = vmul.f32 %v979, %v979
    %v1598 = vmul.f32 %v984, %v984
    %v1599 = vmul.f32 %v989, %v989
    %v1600 = vmul.f32 %v994, %v994
    %v1601 = vmul.f32 %v999, %v999
    %v1602 = vmul.f32 %v1004, %v1004
    %v1603 = vmul.f32 %v1074, %v1074
    %v1604 = vmul.f32 %v1079, %v1079
    %v1605 = vmul.f32 %v1084, %v1084
    %v1606 = vmul.f32 %v1089, %v1089
    %v1607 = vmul.f32 %v1094, %v1094
    %v1608 = vmul.f32 %v1099, %v1099
    %v1609 = vmul.f32 %v1104, %v1104
    %v1610 = vmul.f32 %v1109, %v1109
    %v1611 = vmul.f32 %v1114, %v1114
    %v1612 = vmul.f32 %v1119, %v1119
    %v1613 = vmul.f32 %v1124, %v1124
    %v1614 = vmul.f32 %v1129, %v1129
    %v1615 = vmul.f32 %v1134, %v1134
    %v1616 = vmul.f32 %v1139, %v1139
    %v1617 = vmul.f32 %v1144, %v1144
    %v1618 = vmul.f32 %v1149, %v1149
    %v1619 = vmul.f32 %v929, %v1074
    %v1620 = vmul.f32 %v934, %v1079
    %v1621 = vmul.f32 %v939, %v1084
    %v1622 = vmul.f32 %v944, %v1089
    %v1623 = vmul.f32 %v949, %v1094
    %v1624 = vmul.f32 %v954, %v1099
    %v1625 = vmul.f32 %v959, %v1104
    %v1626 = vmul.f32 %v964, %v1109
    %v1627 = vmul.f32 %v969, %v1114
    %v1628 = vmul.f32 %v974, %v1119
    %v1629 = vmul.f32 %v979, %v1124
    %v1630 = vmul.f32 %v984, %v1129
    %v1631 = vmul.f32 %v989, %v1134
    %v1632 = vmul.f32 %v994, %v1139
    %v1633 = vmul.f32 %v999, %v1144
    %v1634 = vmul.f32 %v1004, %v1149
    %v1635 = vsub.f32 %v1219, %v1587
    %v1636 = vsub.f32 %v1224, %v1588
    %v1637 = vsub.f32 %v1229, %v1589
    %v1638 = vsub.f32 %v1234, %v1590
    %v1639 = vsub.f32 %v1239, %v1591
    %v1640 = vsub.f32 %v1244, %v1592
    %v1641 = vsub.f32 %v1249, %v1593
    %v1642 = vsub.f32 %v1254, %v1594
    %v1643 = vsub.f32 %v1259, %v1595
    %v1644 = vsub.f32 %v1264, %v1596
    %v1645 = vsub.f32 %v1269, %v1597
    %v1646 = vsub.f32 %v1274, %v1598
    %v1647 = vsub.f32 %v1279, %v1599
    %v1648 = vsub.f32 %v1284, %v1600
    %v1649 = vsub.f32 %v1289, %v1601
    %v1650 = vsub.f32 %v1294, %v1602
    %v1651 = vsub.f32 %v1364, %v1603
    %v1652 = vsub.f32 %v1369, %v1604
    %v1653 = vsub.f32 %v1374, %v1605
    %v1654 = vsub.f32 %v1379, %v1606
    %v1655 = vsub.f32 %v1384, %v1607
    %v1656 = vsub.f32 %v1389, %v1608
    %v1657 = vsub.f32 %v1394, %v1609
    %v1658 = vsub.f32 %v1399, %v1610
    %v1659 = vsub.f32 %v1404, %v1611
    %v1660 = vsub.f32 %v1409, %v1612
    %v1661 = vsub.f32 %v1414, %v1613
    %v1662 = vsub.f32 %v1419, %v1614
    %v1663 = vsub.f32 %v1424, %v1615
    %v1664 = vsub.f32 %v1429, %v1616
    %v1665 = vsub.f32 %v1434, %v1617
    %v1666 = vsub.f32 %v1439, %v1618
    %v1667 = vsub.f32 %v1509, %v1619
    %v1668 = vsub.f32 %v1514, %v1620
    %v1669 = vsub.f32 %v1519, %v1621
    %v1670 = vsub.f32 %v1524, %v1622
    %v1671 = vsub.f32 %v1529, %v1623
    %v1672 = vsub.f32 %v1534, %v1624
    %v1673 = vsub.f32 %v1539, %v1625
    %v1674 = vsub.f32 %v1544, %v1626
    %v1675 = vsub.f32 %v1549, %v1627
    %v1676 = vsub.f32 %v1554, %v1628
    %v1677 = vsub.f32 %v1559, %v1629
    %v1678 = vsub.f32 %v1564, %v1630
    %v1679 = vsub.f32 %v1569, %v1631
    %v1680 = vsub.f32 %v1574, %v1632
    %v1681 = vsub.f32 %v1579, %v1633
    %v1682 = vsub.f32 %v1584, %v1634
    %v1683 = vmul.f32 %v1619, 2.0
    %v1684 = vmul.f32 %v1620, 2.0
    %v1685 = vmul.f32 %v1621, 2.0
    %v1686 = vmul.f32 %v1622, 2.0
    %v1687 = vmul.f32 %v1623, 2.0
    %v1688 = vmul.f32 %v1624, 2.0
    %v1689 = vmul.f32 %v1625, 2.0
    %v1690 = vmul.f32 %v1626, 2.0
    %v1691 = vmul.f32 %v1627, 2.0
    %v1692 = vmul.f32 %v1628, 2.0
    %v1693 = vmul.f32 %v1629, 2.0
    %v1694 = vmul.f32 %v1630, 2.0
    %v1695 = vmul.f32 %v1631, 2.0
    %v1696 = vmul.f32 %v1632, 2.0
    %v1697 = vmul.f32 %v1633, 2.0
    %v1698 = vmul.f32 %v1634, 2.0
    %v1699 = vadd.f32 %v1683, 0.0001
    %v1700 = vadd.f32 %v1684, 0.0001
    %v1701 = vadd.f32 %v1685, 0.0001
    %v1702 = vadd.f32 %v1686, 0.0001
    %v1703 = vadd.f32 %v1687, 0.0001
    %v1704 = vadd.f32 %v1688, 0.0001
    %v1705 = vadd.f32 %v1689, 0.0001
    %v1706 = vadd.f32 %v1690, 0.0001
    %v1707 = vadd.f32 %v1691, 0.0001
    %v1708 = vadd.f32 %v1692, 0.0001
    %v1709 = vadd.f32 %v1693, 0.0001
    %v1710 = vadd.f32 %v1694, 0.0001
    %v1711 = vadd.f32 %v1695, 0.0001
    %v1712 = vadd.f32 %v1696, 0.0001
    %v1713 = vadd.f32 %v1697, 0.0001
    %v1714 = vadd.f32 %v1698, 0.0001
    %v1715 = vmul.f32 %v1667, 2.0
    %v1716 = vmul.f32 %v1668, 2.0
    %v1717 = vmul.f32 %v1669, 2.0
    %v1718 = vmul.f32 %v1670, 2.0
    %v1719 = vmul.f32 %v1671, 2.0
    %v1720 = vmul.f32 %v1672, 2.0
    %v1721 = vmul.f32 %v1673, 2.0
    %v1722 = vmul.f32 %v1674, 2.0
    %v1723 = vmul.f32 %v1675, 2.0
    %v1724 = vmul.f32 %v1676, 2.0
    %v1725 = vmul.f32 %v1677, 2.0
    %v1726 = vmul.f32 %v1678, 2.0
    %v1727 = vmul.f32 %v1679, 2.0
    %v1728 = vmul.f32 %v1680, 2.0
    %v1729 = vmul.f32 %v1681, 2.0
    %v1730 = vmul.f32 %v1682, 2.0
    %v1731 = vadd.f32 %v1715, 0.0009
    %v1732 = vadd.f32 %v1716, 0.0009
    %v1733 = vadd.f32 %v1717, 0.0009
    %v1734 = vadd.f32 %v1718, 0.0009
    %v1735 = vadd.f32 %v1719, 0.0009
    %v1736 = vadd.f32 %v1720, 0.0009
    %v1737 = vadd.f32 %v1721, 0.0009
    %v1738 = vadd.f32 %v1722, 0.0009
    %v1739 = vadd.f32 %v1723, 0.0009
    %v1740 = vadd.f32 %v1724, 0.0009
    %v1741 = vadd.f32 %v1725, 0.0009
    %v1742 = vadd.f32 %v1726, 0.0009
    %v1743 = vadd.f32 %v1727, 0.0009
    %v1744 = vadd.f32 %v1728, 0.0009
    %v1745 = vadd.f32 %v1729, 0.0009
    %v1746 = vadd.f32 %v1730, 0.0009
    %v1747 = vmul.f32 %v1699, %v1731
    %v1748 = vmul.f32 %v1700, %v1732
    %v1749 = vmul.f32 %v1701, %v1733
    %v1750 = vmul.f32 %v1702, %v1734
    %v1751 = vmul.f32 %v1703, %v1735
    %v1752 = vmul.f32 %v1704, %v1736
    %v1753 = vmul.f32 %v1705, %v1737
    %v1754 = vmul.f32 %v1706, %v1738
    %v1755 = vmul.f32 %v1707, %v1739
    %v1756 = vmul.f32 %v1708, %v1740
    %v1757 = vmul.f32 %v1709, %v1741
    %v1758 = vmul.f32 %v1710, %v1742
    %v1759 = vmul.f32 %v1711, %v1743
    %v1760 = vmul.f32 %v1712, %v1744
    %v1761 = vmul.f32 %v1713, %v1745
    %v1762 = vmul.f32 %v1714, %v1746
    %v1763 = vadd.f32 %v1587, %v1603
    %v1764 = vadd.f32 %v1588, %v1604
    %v1765 = vadd.f32 %v1589, %v1605
    %v1766 = vadd.f32 %v1590, %v1606
    %v1767 = vadd.f32 %v1591, %v1607
    %v1768 = vadd.f32 %v1592, %v1608
    %v1769 = vadd.f32 %v1593, %v1609
    %v1770 = vadd.f32 %v1594, %v1610
    %v1771 = vadd.f32 %v1595, %v1611
    %v1772 = vadd.f32 %v1596, %v1612
    %v1773 = vadd.f32 %v1597, %v1613
    %v1774 = vadd.f32 %v1598, %v1614
    %v1775 = vadd.f32 %v1599, %v1615
    %v1776 = vadd.f32 %v1600, %v1616
    %v1777 = vadd.f32 %v1601, %v1617
    %v1778 = vadd.f32 %v1602, %v1618
    %v1779 = vadd.f32 %v1763, 0.0001
    %v1780 = vadd.f32 %v1764, 0.0001
    %v1781 = vadd.f32 %v1765, 0.0001
    %v1782 = vadd.f32 %v1766, 0.0001
    %v1783 = vadd.f32 %v1767, 0.0001
    %v1784 = vadd.f32 %v1768, 0.0001
    %v1785 = vadd.f32 %v1769, 0.0001
    %v1786 = vadd.f32 %v1770, 0.0001
    %v1787 = vadd.f32 %v1771, 0.0001
    %v1788 = vadd.f32 %v1772, 0.0001
    %v1789 = vadd.f32 %v1773, 0.0001
    %v1790 = vadd.f32 %v1774, 0.0001
    %v1791 = vadd.f32 %v1775, 0.0001
    %v1792 = vadd.f32 %v1776, 0.0001
    %v1793 = vadd.f32 %v1777, 0.0001
    %v1794 = vadd.f32 %v1778, 0.0001
    %v1795 = vadd.f32 %v1635, %v1651
    %v1796 = vadd.f32 %v1636, %v1652
    %v1797 = vadd.f32 %v1637, %v1653
    %v1798 = vadd.f32 %v1638, %v1654
    %v1799 = vadd.f32 %v1639, %v1655
    %v1800 = vadd.f32 %v1640, %v1656
    %v1801 = vadd.f32 %v1641, %v1657
    %v1802 = vadd.f32 %v1642, %v1658
    %v1803 = vadd.f32 %v1643, %v1659
    %v1804 = vadd.f32 %v1644, %v1660
    %v1805 = vadd.f32 %v1645, %v1661
    %v1806 = vadd.f32 %v1646, %v1662
    %v1807 = vadd.f32 %v1647, %v1663
    %v1808 = vadd.f32 %v1648, %v1664
    %v1809 = vadd.f32 %v1649, %v1665
    %v1810 = vadd.f32 %v1650, %v1666
    %v1811 = vadd.f32 %v1795, 0.0009
    %v1812 = vadd.f32 %v1796, 0.0009
    %v1813 = vadd.f32 %v1797, 0.0009
    %v1814 = vadd.f32 %v1798, 0.0009
    %v1815 = vadd.f32 %v1799, 0.0009
    %v1816 = vadd.f32 %v1800, 0.0009
    %v1817 = vadd.f32 %v1801, 0.0009
    %v1818 = vadd.f32 %v1802, 0.0009
    %v1819 = vadd.f32 %v1803, 0.0009
    %v1820 = vadd.f32 %v1804, 0.0009
    %v1821 = vadd.f32 %v1805, 0.0009
    %v1822 = vadd.f32 %v1806, 0.0009
    %v1823 = vadd.f32 %v1807, 0.0009
    %v1824 = vadd.f32 %v1808, 0.0009
    %v1825 = vadd.f32 %v1809, 0.0009
    %v1826 = vadd.f32 %v1810, 0.0009
    %v1827 = vmul.f32 %v1779, %v1811
    %v1828 = vmul.f32 %v1780, %v1812
    %v1829 = vmul.f32 %v1781, %v1813
    %v1830 = vmul.f32 %v1782, %v1814
    %v1831 = vmul.f32 %v1783, %v1815
    %v1832 = vmul.f32 %v1784, %v1816
    %v1833 = vmul.f32 %v1785, %v1817
    %v1834 = vmul.f32 %v1786, %v1818
    %v1835 = vmul.f32 %v1787, %v1819
    %v1836 = vmul.f32 %v1788, %v1820
    %v1837 = vmul.f32 %v1789, %v1821
    %v1838 = vmul.f32 %v1790, %v1822
    %v1839 = vmul.f32 %v1791, %v1823
    %v1840 = vmul.f32 %v1792, %v1824
    %v1841 = vmul.f32 %v1793, %v1825
    %v1842 = vmul.f32 %v1794, %v1826
    %v1843 = vrcp.pop %v1827
    %v1844 = vrcp.pop %v1828
    %v1845 = vrcp.pop %v1829
    %v1846 = vrcp.pop %v1830
    %v1847 = vrcp.pop %v1831
    %v1848 = vrcp.pop %v1832
    %v1849 = vrcp.pop %v1833
    %v1850 = vrcp.pop %v1834
    %v1851 = vrcp.pop %v1835
    %v1852 = vrcp.pop %v1836
    %v1853 = vrcp.pop %v1837
    %v1854 = vrcp.pop %v1838
    %v1855 = vrcp.pop %v1839
    %v1856 = vrcp.pop %v1840
    %v1857 = vrcp.pop %v1841
    %v1858 = vrcp.pop %v1842
    %v1859 = vmul.f32 %v1827, %v1843
    %v1860 = vmul.f32 %v1828, %v1844
    %v1861 = vmul.f32 %v1829, %v1845
    %v1862 = vmul.f32 %v1830, %v1846
    %v1863 = vmul.f32 %v1831, %v1847
    %v1864 = vmul.f32 %v1832, %v1848
    %v1865 = vmul.f32 %v1833, %v1849
    %v1866 = vmul.f32 %v1834, %v1850
    %v1867 = vmul.f32 %v1835, %v1851
    %v1868 = vmul.f32 %v1836, %v1852
    %v1869 = vmul.f32 %v1837, %v1853
    %v1870 = vmul.f32 %v1838, %v1854
    %v1871 = vmul.f32 %v1839, %v1855
    %v1872 = vmul.f32 %v1840, %v1856
    %v1873 = vmul.f32 %v1841, %v1857
    %v1874 = vmul.f32 %v1842, %v1858
    %v1875 = vsub.f32 2.0, %v1859
    %v1876 = vsub.f32 2.0, %v1860
    %v1877 = vsub.f32 2.0, %v1861
    %v1878 = vsub.f32 2.0, %v1862
    %v1879 = vsub.f32 2.0, %v1863
    %v1880 = vsub.f32 2.0, %v1864
    %v1881 = vsub.f32 2.0, %v1865
    %v1882 = vsub.f32 2.0, %v1866
    %v1883 = vsub.f32 2.0, %v1867
    %v1884 = vsub.f32 2.0, %v1868
    %v1885 = vsub.f32 2.0, %v1869
    %v1886 = vsub.f32 2.0, %v1870
    %v1887 = vsub.f32 2.0, %v1871
    %v1888 = vsub.f32 2.0, %v1872
    %v1889 = vsub.f32 2.0, %v1873
    %v1890 = vsub.f32 2.0, %v1874
    %v1891 = vmul.f32 %v1843, %v1875
    %v1892 = vmul.f32 %v1844, %v1876
    %v1893 = vmul.f32 %v1845, %v1877
    %v1894 = vmul.f32 %v1846, %v1878
    %v1895 = vmul.f32 %v1847, %v1879
    %v1896 = vmul.f32 %v1848, %v1880
    %v1897 = vmul.f32 %v1849, %v1881
    %v1898 = vmul.f32 %v1850, %v1882
    %v1899 = vmul.f32 %v1851, %v1883
    %v1900 = vmul.f32 %v1852, %v1884
    %v1901 = vmul.f32 %v1853, %v1885
    %v1902 = vmul.f32 %v1854, %v1886
    %v1903 = vmul.f32 %v1855, %v1887
    %v1904 = vmul.f32 %v1856, %v1888
    %v1905 = vmul.f32 %v1857, %v1889
    %v1906 = vmul.f32 %v1858, %v1890
    %v1907 = vmul.f32 %v1827, %v1891
    %v1908 = vmul.f32 %v1828, %v1892
    %v1909 = vmul.f32 %v1829, %v1893
    %v1910 = vmul.f32 %v1830, %v1894
    %v1911 = vmul.f32 %v1831, %v1895
    %v1912 = vmul.f32 %v1832, %v1896
    %v1913 = vmul.f32 %v1833, %v1897
    %v1914 = vmul.f32 %v1834, %v1898
    %v1915 = vmul.f32 %v1835, %v1899
    %v1916 = vmul.f32 %v1836, %v1900
    %v1917 = vmul.f32 %v1837, %v1901
    %v1918 = vmul.f32 %v1838, %v1902
    %v1919 = vmul.f32 %v1839, %v1903
    %v1920 = vmul.f32 %v1840, %v1904
    %v1921 = vmul.f32 %v1841, %v1905
    %v1922 = vmul.f32 %v1842, %v1906
    %v1923 = vsub.f32 2.0, %v1907
    %v1924 = vsub.f32 2.0, %v1908
    %v1925 = vsub.f32 2.0, %v1909
    %v1926 = vsub.f32 2.0, %v1910
    %v1927 = vsub.f32 2.0, %v1911
    %v1928 = vsub.f32 2.0, %v1912
    %v1929 = vsub.f32 2.0, %v1913
    %v1930 = vsub.f32 2.0, %v1914
    %v1931 = vsub.f32 2.0, %v1915
    %v1932 = vsub.f32 2.0, %v1916
    %v1933 = vsub.f32 2.0, %v1917
    %v1934 = vsub.f32 2.0, %v1918
    %v1935 = vsub.f32 2.0, %v1919
    %v1936 = vsub.f32 2.0, %v1920
    %v1937 = vsub.f32 2.0, %v1921
    %v1938 = vsub.f32 2.0, %v1922
    %v1939 = vmul.f32 %v1891, %v1923
    %v1940 = vmul.f32 %v1892, %v1924
    %v1941 = vmul.f32 %v1893, %v1925
    %v1942 = vmul.f32 %v1894, %v1926
    %v1943 = vmul.f32 %v1895, %v1927
    %v1944 = vmul.f32 %v1896, %v1928
    %v1945 = vmul.f32 %v1897, %v1929
    %v1946 = vmul.f32 %v1898, %v1930
    %v1947 = vmul.f32 %v1899, %v1931
    %v1948 = vmul.f32 %v1900, %v1932
    %v1949 = vmul.f32 %v1901, %v1933
    %v1950 = vmul.f32 %v1902, %v1934
    %v1951 = vmul.f32 %v1903, %v1935
    %v1952 = vmul.f32 %v1904, %v1936
    %v1953 = vmul.f32 %v1905, %v1937
    %v1954 = vmul.f32 %v1906, %v1938
    %v1955 = vmul.f32 %v1747, %v1939
    %v1956 = vmul.f32 %v1748, %v1940
    %v1957 = vmul.f32 %v1749, %v1941
    %v1958 = vmul.f32 %v1750, %v1942
    %v1959 = vmul.f32 %v1751, %v1943
    %v1960 = vmul.f32 %v1752, %v1944
    %v1961 = vmul.f32 %v1753, %v1945
    %v1962 = vmul.f32 %v1754, %v1946
    %v1963 = vmul.f32 %v1755, %v1947
    %v1964 = vmul.f32 %v1756, %v1948
    %v1965 = vmul.f32 %v1757, %v1949
    %v1966 = vmul.f32 %v1758, %v1950
    %v1967 = vmul.f32 %v1759, %v1951
    %v1968 = vmul.f32 %v1760, %v1952
    %v1969 = vmul.f32 %v1761, %v1953
    %v1970 = vmul.f32 %v1762, %v1954
    %v1971 = vsel %vm156, %v1955, 0.0
    %1972 = vadd.xlane.f32.xlu0 %v1971
    %v1973 = vpop.xlane.xlu0 %1972
    %v1974 = vsel %vm156, %v1956, 0.0
    %1975 = vadd.xlane.f32.xlu0 %v1974
    %v1976 = vpop.xlane.xlu0 %1975
    %v1977 = vsel %vm156, %v1957, 0.0
    %1978 = vadd.xlane.f32.xlu0 %v1977
    %v1979 = vpop.xlane.xlu0 %1978
    %v1980 = vsel %vm156, %v1958, 0.0
    %1981 = vadd.xlane.f32.xlu0 %v1980
    %v1982 = vpop.xlane.xlu0 %1981
    %v1983 = vsel %vm156, %v1959, 0.0
    %1984 = vadd.xlane.f32.xlu0 %v1983
    %v1985 = vpop.xlane.xlu0 %1984
    %v1986 = vsel %vm156, %v1960, 0.0
    %1987 = vadd.xlane.f32.xlu0 %v1986
    %v1988 = vpop.xlane.xlu0 %1987
    %v1989 = vsel %vm156, %v1961, 0.0
    %1990 = vadd.xlane.f32.xlu0 %v1989
    %v1991 = vpop.xlane.xlu0 %1990
    %v1992 = vsel %vm156, %v1962, 0.0
    %1993 = vadd.xlane.f32.xlu0 %v1992
    %v1994 = vpop.xlane.xlu0 %1993
    %v1995 = vsel %vm156, %v1963, 0.0
    %1996 = vadd.xlane.f32.xlu0 %v1995
    %v1997 = vpop.xlane.xlu0 %1996
    %v1998 = vsel %vm156, %v1964, 0.0
    %1999 = vadd.xlane.f32.xlu0 %v1998
    %v2000 = vpop.xlane.xlu0 %1999
    %v2001 = vsel %vm156, %v1965, 0.0
    %2002 = vadd.xlane.f32.xlu0 %v2001
    %v2003 = vpop.xlane.xlu0 %2002
    %v2004 = vsel %vm156, %v1966, 0.0
    %2005 = vadd.xlane.f32.xlu0 %v2004
    %v2006 = vpop.xlane.xlu0 %2005
    %v2007 = vsel %vm156, %v1967, 0.0
    %2008 = vadd.xlane.f32.xlu0 %v2007
    %v2009 = vpop.xlane.xlu0 %2008
    %v2010 = vsel %vm156, %v1968, 0.0
    %2011 = vadd.xlane.f32.xlu0 %v2010
    %v2012 = vpop.xlane.xlu0 %2011
    %v2013 = vsel %vm156, %v1969, 0.0
    %2014 = vadd.xlane.f32.xlu0 %v2013
    %v2015 = vpop.xlane.xlu0 %2014
    %v2016 = vsel %vm156, %v1970, 0.0
    %2017 = vadd.xlane.f32.xlu0 %v2016
    %v2018 = vpop.xlane.xlu0 %2017
    %v2019 = vadd.f32 %v1973, %v1976
    %v2020 = vrot.slane %v2019, 4
    %v2021 = vadd.f32 %v2019, %v2020
    %v2022 = vrot.slane %v2021, 2
    %v2023 = vadd.f32 %v2021, %v2022
    %v2024 = vrot.slane %v2023, 1
    %v2025 = vadd.f32 %v2023, %v2024
    %v2026 = vadd.f32 %v1979, %v1982
    %v2027 = vrot.slane %v2026, 4
    %v2028 = vadd.f32 %v2026, %v2027
    %v2029 = vrot.slane %v2028, 2
    %v2030 = vadd.f32 %v2028, %v2029
    %v2031 = vrot.slane %v2030, 1
    %v2032 = vadd.f32 %v2030, %v2031
    %v2033 = vadd.f32 %v1985, %v1988
    %v2034 = vrot.slane %v2033, 4
    %v2035 = vadd.f32 %v2033, %v2034
    %v2036 = vrot.slane %v2035, 2
    %v2037 = vadd.f32 %v2035, %v2036
    %v2038 = vrot.slane %v2037, 1
    %v2039 = vadd.f32 %v2037, %v2038
    %v2040 = vadd.f32 %v1991, %v1994
    %v2041 = vrot.slane %v2040, 4
    %v2042 = vadd.f32 %v2040, %v2041
    %v2043 = vrot.slane %v2042, 2
    %v2044 = vadd.f32 %v2042, %v2043
    %v2045 = vrot.slane %v2044, 1
    %v2046 = vadd.f32 %v2044, %v2045
    %v2047 = vadd.f32 %v1997, %v2000
    %v2048 = vrot.slane %v2047, 4
    %v2049 = vadd.f32 %v2047, %v2048
    %v2050 = vrot.slane %v2049, 2
    %v2051 = vadd.f32 %v2049, %v2050
    %v2052 = vrot.slane %v2051, 1
    %v2053 = vadd.f32 %v2051, %v2052
    %v2054 = vadd.f32 %v2003, %v2006
    %v2055 = vrot.slane %v2054, 4
    %v2056 = vadd.f32 %v2054, %v2055
    %v2057 = vrot.slane %v2056, 2
    %v2058 = vadd.f32 %v2056, %v2057
    %v2059 = vrot.slane %v2058, 1
    %v2060 = vadd.f32 %v2058, %v2059
    %v2061 = vadd.f32 %v2009, %v2012
    %v2062 = vrot.slane %v2061, 4
    %v2063 = vadd.f32 %v2061, %v2062
    %v2064 = vrot.slane %v2063, 2
    %v2065 = vadd.f32 %v2063, %v2064
    %v2066 = vrot.slane %v2065, 1
    %v2067 = vadd.f32 %v2065, %v2066
    %v2068 = vadd.f32 %v2015, %v2018
    %v2069 = vrot.slane %v2068, 4
    %v2070 = vadd.f32 %v2068, %v2069
    %v2071 = vrot.slane %v2070, 2
    %v2072 = vadd.f32 %v2070, %v2071
    %v2073 = vrot.slane %v2072, 1
    %v2074 = vadd.f32 %v2072, %v2073
    %vm2075 = vcmask 0
    %2076 = vst.msk [vmem:[%s4] sm:$0x1] %vm2075, %v2025
    %2077 = vst.msk [vmem:[%s4 + $0x1] sm:$0x1] %vm2075, %v2032
    %2078 = vst.msk [vmem:[%s4 + $0x2] sm:$0x1] %vm2075, %v2039
    %2079 = vst.msk [vmem:[%s4 + $0x3] sm:$0x1] %vm2075, %v2046
    %2080 = vst.msk [vmem:[%s4 + $0x4] sm:$0x1] %vm2075, %v2053
    %2081 = vst.msk [vmem:[%s4 + $0x5] sm:$0x1] %vm2075, %v2060
    %2082 = vst.msk [vmem:[%s4 + $0x6] sm:$0x1] %vm2075, %v2067
    %2083 = vst.msk [vmem:[%s4 + $0x7] sm:$0x1] %vm2075, %v2074
    // Predicated region
    $region30: #{ssim.1} parent=1 // pred_check
      _
    $region31: #{ssim.1} parent=1 // pred_check_branch
      %2085 = sbr.rel (0) target = $region33
    $region32: #{ssim.1} parent=1 // pred_region
      _
    $region33: #{ssim.1} parent=1 // pred_fallthru
      _
    // Predicated region
    $region34: #{ssim.1} parent=1 // pred_check
      _
    $region35: #{ssim.1} parent=1 // pred_check_branch
      %2087 = sbr.rel (0) target = $region37
    $region36: #{ssim.1} parent=1 // pred_region
      _
    $region37: #{ssim.1} parent=1 // pred_fallthru
      _
    %2088 = vsyncpa [#allocation3], 1
    %2089 = vsyncpa [#allocation5], 1

</llo_original>
